<compile_context>
chip_gen: v7x
topology: tpu7x:2x2x1
jax: 0.10.0
libtpu: 0.0.40
codegen_flags: <defaults>
</compile_context>

<pallas_src>
import jax
import jax.numpy as jnp
import numpy as np
from jax.experimental import pallas as pl
from jax.experimental.pallas import tpu as pltpu

_LANE = 128
_SUBLANE = 8


def _round_up(v, m):
    return ((v + m - 1) // m) * m


# ---------------------------------------------------------------------------
# Fused Pallas kernel: all GCN layers + log_softmax in one invocation
# ---------------------------------------------------------------------------
def _make_fused_gcn_kernel(num_hidden):
    """Builds a kernel with signature:
       (a, x, [w_i, scale_i, shift_i] * num_hidden, w_out, b_out, cls_mask, o)
    All refs are full (padded) arrays resident in VMEM.
    """

    def kernel(*refs):
        a_ref, x_ref = refs[0], refs[1]
        idx = 2

        a = a_ref[...]          # (Np, Np)  normalized adjacency, stays in VMEM
        h = x_ref[...]          # (Np, Fp)  node features

        # Hidden layers: relu(bn(A @ (H @ W)))   (conv bias folded into shift)
        for _ in range(num_hidden):
            w_ref, scale_ref, shift_ref = refs[idx], refs[idx + 1], refs[idx + 2]
            idx += 3
            xw = jnp.dot(h, w_ref[...], preferred_element_type=jnp.float32)
            h = jnp.dot(a, xw, preferred_element_type=jnp.float32)
            h = h * scale_ref[...] + shift_ref[...]     # BatchNorm1d (eval) + bias
            h = jnp.maximum(h, 0.0)                     # ReLU (Dropout = identity)

        # Output layer + row-wise log_softmax over the valid class columns.
        w_ref, b_ref, mask_ref, o_ref = (refs[idx], refs[idx + 1],
                                         refs[idx + 2], refs[idx + 3])
        xw = jnp.dot(h, w_ref[...], preferred_element_type=jnp.float32)
        logits = jnp.dot(a, xw, preferred_element_type=jnp.float32) + b_ref[...]
        logits = logits + mask_ref[...]                 # -1e30 on padded classes
        m = jnp.max(logits, axis=1, keepdims=True)
        lse = jnp.log(jnp.sum(jnp.exp(logits - m), axis=1, keepdims=True)) + m
        o_ref[...] = (logits - lse).astype(o_ref.dtype)

    return kernel


# ---------------------------------------------------------------------------
# Wrapper: pad to lane/sublane-friendly shapes, fold biases, call the kernel
# ---------------------------------------------------------------------------
def gcn_forward(params, x, a_hat):
    n, f_in = x.shape
    w_out, b_out = params["out"]
    num_classes = w_out.shape[1]

    n_pad = _round_up(n, _SUBLANE)
    f_in_pad = _round_up(f_in, _LANE)

    a_p = jnp.pad(a_hat, ((0, n_pad - n), (0, n_pad - n)))
    x_p = jnp.pad(x, ((0, n_pad - n), (0, f_in_pad - f_in)))

    flat_inputs = [a_p, x_p]
    prev_pad = f_in_pad
    for (w, b, scale, shift) in params["hidden"]:
        fin, fout = w.shape
        fout_pad = _round_up(fout, _LANE)
        w_p = jnp.pad(w, ((0, prev_pad - fin), (0, fout_pad - fout)))
        shift_fold = shift + b * scale          # fold GCNConv bias into BN shift
        scale_p = jnp.pad(scale, ((0, 0), (0, fout_pad - fout)))
        shift_p = jnp.pad(shift_fold, ((0, 0), (0, fout_pad - fout)))
        flat_inputs += [w_p, scale_p, shift_p]
        prev_pad = fout_pad

    c_pad = _round_up(num_classes, _LANE)
    w_out_p = jnp.pad(w_out, ((0, prev_pad - w_out.shape[0]), (0, c_pad - num_classes)))
    b_out_p = jnp.pad(b_out, ((0, 0), (0, c_pad - num_classes)))
    col = jax.lax.broadcasted_iota(jnp.int32, (1, c_pad), 1)
    cls_mask = jnp.where(col < num_classes, 0.0, -1e30).astype(jnp.float32)
    flat_inputs += [w_out_p, b_out_p, cls_mask]

    kernel = _make_fused_gcn_kernel(len(params["hidden"]))
    out_p = pl.pallas_call(
        kernel,
        out_shape=jax.ShapeDtypeStruct((n_pad, c_pad), jnp.float32),
        in_specs=[pl.BlockSpec(memory_space=pltpu.MemorySpace.VMEM)
                  for _ in flat_inputs],
        out_specs=pl.BlockSpec(memory_space=pltpu.MemorySpace.VMEM),
    )(*flat_inputs)

    return out_p[:n, :num_classes]


# ---------------------------------------------------------------------------
# Graph / parameter construction (plain-JAX glue)
# ---------------------------------------------------------------------------
def build_normalized_adjacency(edge_index, num_nodes):
    """Dense D^{-1/2} (A + I) D^{-1/2}; A[dst, src] counts edges src -> dst."""
    src, dst = edge_index[0], edge_index[1]
    a = jnp.zeros((num_nodes, num_nodes), jnp.float32).at[dst, src].add(1.0)
    a = a + jnp.eye(num_nodes, dtype=jnp.float32)          # self loops
    deg = jnp.sum(a, axis=1)                               # in-degree (+1)
    d_inv_sqrt = 1.0 / jnp.sqrt(deg)
    return d_inv_sqrt[:, None] * a * d_inv_sqrt[None, :]


def init_params(key, num_features, hidden_channels, num_classes, num_layers):
    """Deterministic synthetic parameters matching the torch module's shapes."""
    eps = 1e-5
    dims = [num_features] + [hidden_channels] * (num_layers - 1) + [num_classes]
    hidden = []
    keys = jax.random.split(key, 3 * num_layers)
    for li in range(num_layers - 1):
        fin, fout = dims[li], dims[li + 1]
        kw, kg, kb = keys[3 * li], keys[3 * li + 1], keys[3 * li + 2]
        limit = jnp.sqrt(6.0 / (fin + fout))               # glorot (GCNConv default)
        w = jax.random.uniform(kw, (fin, fout), jnp.float32, -limit, limit)
        b = jnp.zeros((1, fout), jnp.float32)              # GCNConv bias init = zeros
        gamma = 1.0 + 0.1 * jax.random.normal(kg, (fout,), jnp.float32)
        beta = 0.1 * jax.random.normal(kb, (fout,), jnp.float32)
        running_mean = jnp.zeros((fout,), jnp.float32)
        running_var = jnp.ones((fout,), jnp.float32)
        scale = gamma / jnp.sqrt(running_var + eps)
        shift = beta - running_mean * scale
        hidden.append((w, b, scale[None, :], shift[None, :]))
    fin, fout = dims[-2], dims[-1]
    limit = jnp.sqrt(6.0 / (fin + fout))
    w_out = jax.random.uniform(keys[-1], (fin, fout), jnp.float32, -limit, limit)
    b_out = jnp.zeros((1, fout), jnp.float32)
    return {"hidden": hidden, "out": (w_out, b_out)}


# ---------------------------------------------------------------------------
# Pure-JAX reference for correctness check
# ---------------------------------------------------------------------------
def gcn_reference(params, x, a_hat):
    h = x
    for (w, b, scale, shift) in params["hidden"]:
        h = jnp.maximum((a_hat @ (h @ w) + b) * scale + shift, 0.0)
    w, b = params["out"]
    logits = a_hat @ (h @ w) + b
    return jax.nn.log_softmax(logits, axis=1)


# ---------------------------------------------------------------------------
if __name__ == "__main__":
    # Small synthetic problem; N deliberately NOT a multiple of 8/64 to exercise
    # the padding / remainder handling.
    N = 123
    NUM_FEATURES = 16
    HIDDEN = 32
    NUM_CLASSES = 4
    NUM_LAYERS = 3
    NUM_EDGES = 512

    key = jax.random.PRNGKey(0)
    k_x, k_e, k_p = jax.random.split(key, 3)

    x = jax.random.normal(k_x, (N, NUM_FEATURES), jnp.float32)
    edge_index = jax.random.randint(k_e, (2, NUM_EDGES), 0, N, jnp.int32)

    a_hat = build_normalized_adjacency(edge_index, N)
    params = init_params(k_p, NUM_FEATURES, HIDDEN, NUM_CLASSES, NUM_LAYERS)

    out = gcn_forward(params, x, a_hat)
    out = jax.block_until_ready(out)

    ref = gcn_reference(params, x, a_hat)
    np.testing.assert_allclose(np.asarray(out), np.asarray(ref), rtol=2e-2, atol=2e-3)

    print("KERNEL_OK")
</pallas_src>

<mosaic_0001>
module attributes {stable_mosaic.version = 11 : i64} {
  func.func @kernel(%arg0: memref<128x128xf32, #tpu.memory_space<vmem>>, %arg1: memref<128x128xf32, #tpu.memory_space<vmem>>, %arg2: memref<128x128xf32, #tpu.memory_space<vmem>>, %arg3: memref<1x128xf32, #tpu.memory_space<vmem>>, %arg4: memref<1x128xf32, #tpu.memory_space<vmem>>, %arg5: memref<128x128xf32, #tpu.memory_space<vmem>>, %arg6: memref<1x128xf32, #tpu.memory_space<vmem>>, %arg7: memref<1x128xf32, #tpu.memory_space<vmem>>, %arg8: memref<128x128xf32, #tpu.memory_space<vmem>>, %arg9: memref<1x128xf32, #tpu.memory_space<vmem>>, %arg10: memref<1x128xf32, #tpu.memory_space<vmem>>, %arg11: memref<128x128xf32, #tpu.memory_space<vmem>>) attributes {dimension_semantics = [], scalar_prefetch = 0 : i64, scratch_operands = 0 : i64, tpu.core_type = #tpu.core_type<tc>} {
    %c0 = arith.constant 0 : index
    %c0_0 = arith.constant 0 : index
    %0 = vector.load %arg0[%c0, %c0_0] : memref<128x128xf32, #tpu.memory_space<vmem>>, vector<128x128xf32>
    %c0_1 = arith.constant 0 : index
    %c0_2 = arith.constant 0 : index
    %1 = vector.load %arg1[%c0_1, %c0_2] : memref<128x128xf32, #tpu.memory_space<vmem>>, vector<128x128xf32>
    %c0_3 = arith.constant 0 : index
    %c0_4 = arith.constant 0 : index
    %2 = vector.load %arg2[%c0_3, %c0_4] : memref<128x128xf32, #tpu.memory_space<vmem>>, vector<128x128xf32>
    %cst = arith.constant dense<0.000000e+00> : vector<128x128xf32>
    %3 = tpu.matmul %1, %2, %cst {dimension_numbers = #tpu.dot_dimension_numbers<[1], [0], [0], [1], [0, 0, 1, 1], [], []>} : vector<128x128xf32>, vector<128x128xf32>, vector<128x128xf32> -> vector<128x128xf32>
    %cst_5 = arith.constant dense<0.000000e+00> : vector<128x128xf32>
    %4 = tpu.matmul %0, %3, %cst_5 {dimension_numbers = #tpu.dot_dimension_numbers<[1], [0], [0], [1], [0, 0, 1, 1], [], []>} : vector<128x128xf32>, vector<128x128xf32>, vector<128x128xf32> -> vector<128x128xf32>
    %c0_6 = arith.constant 0 : index
    %c0_7 = arith.constant 0 : index
    %5 = vector.load %arg3[%c0_6, %c0_7] : memref<1x128xf32, #tpu.memory_space<vmem>>, vector<1x128xf32>
    %6 = vector.broadcast %5 : vector<1x128xf32> to vector<128x128xf32>
    %7 = arith.mulf %4, %6 : vector<128x128xf32>
    %c0_8 = arith.constant 0 : index
    %c0_9 = arith.constant 0 : index
    %8 = vector.load %arg4[%c0_8, %c0_9] : memref<1x128xf32, #tpu.memory_space<vmem>>, vector<1x128xf32>
    %9 = vector.broadcast %8 : vector<1x128xf32> to vector<128x128xf32>
    %10 = arith.addf %7, %9 : vector<128x128xf32>
    %cst_10 = arith.constant 0.000000e+00 : f32
    %11 = vector.broadcast %cst_10 : f32 to vector<128x128xf32>
    %12 = arith.maximumf %10, %11 : vector<128x128xf32>
    %c0_11 = arith.constant 0 : index
    %c0_12 = arith.constant 0 : index
    %13 = vector.load %arg5[%c0_11, %c0_12] : memref<128x128xf32, #tpu.memory_space<vmem>>, vector<128x128xf32>
    %cst_13 = arith.constant dense<0.000000e+00> : vector<128x128xf32>
    %14 = tpu.matmul %12, %13, %cst_13 {dimension_numbers = #tpu.dot_dimension_numbers<[1], [0], [0], [1], [0, 0, 1, 1], [], []>} : vector<128x128xf32>, vector<128x128xf32>, vector<128x128xf32> -> vector<128x128xf32>
    %cst_14 = arith.constant dense<0.000000e+00> : vector<128x128xf32>
    %15 = tpu.matmul %0, %14, %cst_14 {dimension_numbers = #tpu.dot_dimension_numbers<[1], [0], [0], [1], [0, 0, 1, 1], [], []>} : vector<128x128xf32>, vector<128x128xf32>, vector<128x128xf32> -> vector<128x128xf32>
    %c0_15 = arith.constant 0 : index
    %c0_16 = arith.constant 0 : index
    %16 = vector.load %arg6[%c0_15, %c0_16] : memref<1x128xf32, #tpu.memory_space<vmem>>, vector<1x128xf32>
    %17 = vector.broadcast %16 : vector<1x128xf32> to vector<128x128xf32>
    %18 = arith.mulf %15, %17 : vector<128x128xf32>
    %c0_17 = arith.constant 0 : index
    %c0_18 = arith.constant 0 : index
    %19 = vector.load %arg7[%c0_17, %c0_18] : memref<1x128xf32, #tpu.memory_space<vmem>>, vector<1x128xf32>
    %20 = vector.broadcast %19 : vector<1x128xf32> to vector<128x128xf32>
    %21 = arith.addf %18, %20 : vector<128x128xf32>
    %cst_19 = arith.constant 0.000000e+00 : f32
    %22 = vector.broadcast %cst_19 : f32 to vector<128x128xf32>
    %23 = arith.maximumf %21, %22 : vector<128x128xf32>
    %c0_20 = arith.constant 0 : index
    %c0_21 = arith.constant 0 : index
    %24 = vector.load %arg8[%c0_20, %c0_21] : memref<128x128xf32, #tpu.memory_space<vmem>>, vector<128x128xf32>
    %cst_22 = arith.constant dense<0.000000e+00> : vector<128x128xf32>
    %25 = tpu.matmul %23, %24, %cst_22 {dimension_numbers = #tpu.dot_dimension_numbers<[1], [0], [0], [1], [0, 0, 1, 1], [], []>} : vector<128x128xf32>, vector<128x128xf32>, vector<128x128xf32> -> vector<128x128xf32>
    %cst_23 = arith.constant dense<0.000000e+00> : vector<128x128xf32>
    %26 = tpu.matmul %0, %25, %cst_23 {dimension_numbers = #tpu.dot_dimension_numbers<[1], [0], [0], [1], [0, 0, 1, 1], [], []>} : vector<128x128xf32>, vector<128x128xf32>, vector<128x128xf32> -> vector<128x128xf32>
    %c0_24 = arith.constant 0 : index
    %c0_25 = arith.constant 0 : index
    %27 = vector.load %arg9[%c0_24, %c0_25] : memref<1x128xf32, #tpu.memory_space<vmem>>, vector<1x128xf32>
    %28 = vector.broadcast %27 : vector<1x128xf32> to vector<128x128xf32>
    %29 = arith.addf %26, %28 : vector<128x128xf32>
    %c0_26 = arith.constant 0 : index
    %c0_27 = arith.constant 0 : index
    %30 = vector.load %arg10[%c0_26, %c0_27] : memref<1x128xf32, #tpu.memory_space<vmem>>, vector<1x128xf32>
    %31 = vector.broadcast %30 : vector<1x128xf32> to vector<128x128xf32>
    %32 = arith.addf %29, %31 : vector<128x128xf32>
    %cst_28 = arith.constant dense<0xFF800000> : vector<128xf32>
    %33 = vector.multi_reduction <maximumf>, %32, %cst_28 [1] : vector<128x128xf32> to vector<128xf32>
    %34 = vector.shape_cast %33 : vector<128xf32> to vector<128x1xf32>
    %35 = vector.broadcast %34 : vector<128x1xf32> to vector<128x128xf32>
    %36 = arith.subf %32, %35 : vector<128x128xf32>
    %37 = math.exp %36 : vector<128x128xf32>
    %cst_29 = arith.constant dense<0.000000e+00> : vector<128xf32>
    %38 = vector.multi_reduction <add>, %37, %cst_29 [1] : vector<128x128xf32> to vector<128xf32>
    %39 = vector.shape_cast %38 : vector<128xf32> to vector<128x1xf32>
    %40 = math.log %39 : vector<128x1xf32>
    %41 = arith.addf %40, %34 : vector<128x1xf32>
    %42 = vector.broadcast %41 : vector<128x1xf32> to vector<128x128xf32>
    %43 = arith.subf %32, %42 : vector<128x128xf32>
    %c0_30 = arith.constant 0 : index
    %c0_31 = arith.constant 0 : index
    %44 = vector.load %arg11[%c0_30, %c0_31] : memref<128x128xf32, #tpu.memory_space<vmem>>, vector<128x128xf32>
    tpu.vector_store %arg11[%c0_30, %c0_31], %43 {strides = array<i32>} : memref<128x128xf32, #tpu.memory_space<vmem>>, vector<128x128xf32>,
    return
  }
}

</mosaic_0001>

<llo_original>
// kernel: tpu_custom_call.1
$region0: #{tpu_custom_call.1}
  #allocation0 [shape = 'u32[]', space=smem, size = 0x4, offset = 0x4, fixed_abs, tag = 'smem constant byte address 0x4 - core index']
  #allocation1 [shape = 'u32[144,128]{1,0:T(1,128)}', space=vmem, size = 0x12000, scoped, tag = 'internal scratch']
  %s0 = inlined_call_operand.hbm [shape: f32[128,128], index: 0, kind: input, shape index: {}]
  %s1 = inlined_call_operand.hbm [shape: f32[128,128], index: 1, kind: input, shape index: {}]
  %s2 = inlined_call_operand.hbm [shape: f32[128,128], index: 2, kind: input, shape index: {}]
  %s3 = inlined_call_operand.vmem [shape: f32[1,128], index: 3, kind: input, shape index: {}]
  %s4 = inlined_call_operand.vmem [shape: f32[1,128], index: 4, kind: input, shape index: {}]
  %s5 = inlined_call_operand.hbm [shape: f32[128,128], index: 5, kind: input, shape index: {}]
  %s6 = inlined_call_operand.vmem [shape: f32[1,128], index: 6, kind: input, shape index: {}]
  %s7 = inlined_call_operand.vmem [shape: f32[1,128], index: 7, kind: input, shape index: {}]
  %s8 = inlined_call_operand.hbm [shape: f32[128,128], index: 8, kind: input, shape index: {}]
  %s9 = inlined_call_operand.vmem [shape: f32[1,128], index: 9, kind: input, shape index: {}]
  %s10 = inlined_call_operand.vmem [shape: f32[1,128], index: 10, kind: input, shape index: {}]
  %s11 = inlined_call_operand.hbm [shape: f32[128,128], index: 11, kind: output, shape index: {}]
  %s12 = sld [smem:[#allocation0]]
  $region74: #{tpu_custom_call.1} parent=0
    _
  %s14 = ssub.s32 1, %s12
  %s15 = scalar_select 0, %s14, %s12
  $region1: #{tpu_custom_call.1} parent=0
    #allocation2 [shape = 'u8[65536]{0}', space=vmem, size = 0x10000, scoped, tag = 'input window, operand 0, single buffered']
    #allocation3 [shape = 's32[1]{0}', space=sflag, size = 0x4, scoped, tag = 'scoped memory for tpu_custom_call.1']
    #allocation4 [shape = 's32[1]{0}', space=sflag, size = 0x4, scoped, tag = 'scoped memory for tpu_custom_call.1']
    #allocation5 [shape = 'u8[65536]{0}', space=vmem, size = 0x10000, scoped, tag = 'input window, operand 1, single buffered']
    #allocation6 [shape = 's32[1]{0}', space=sflag, size = 0x4, scoped, tag = 'scoped memory for tpu_custom_call.1']
    #allocation7 [shape = 'u8[65536]{0}', space=vmem, size = 0x10000, scoped, tag = 'input window, operand 2, single buffered']
    #allocation8 [shape = 'u8[65536]{0}', space=vmem, size = 0x10000, scoped, tag = 'input window, operand 5, single buffered']
    #allocation9 [shape = 's32[1]{0}', space=sflag, size = 0x4, scoped, tag = 'scoped memory for tpu_custom_call.1']
    #allocation10 [shape = 'u8[65536]{0}', space=vmem, size = 0x10000, scoped, tag = 'input window, operand 8, single buffered']
    #allocation11 [shape = 'u8[65536]{0}', space=vmem, size = 0x10000, scoped, tag = 'output window, operand 0, single buffered']
    %16 = vsyncpa [#allocation3], 0
    %17 = vsyncpa [#allocation6], 0
    %18 = vsyncpa [#allocation9], 0
    %19 = vsyncpa [#allocation4], 0
    // Predicated region
    $region2: #{tpu_custom_call.1} parent=1 // pred_check
      _
    $region3: #{tpu_custom_call.1} parent=1 // pred_check_branch
      %21 = sbr.rel (0) target = $region5
    $region4: #{tpu_custom_call.1} parent=1 // pred_region
      %s23 = ssub.s32 2048, 2048
      %24 = vsyncadd [#allocation3], %s23
      %s25 = sshll.u32 [#allocation2], 4
      %s26 = int_to_ptr.vmem [resolvable:$true] %s25
      %31 = dma.hbm_to_vmem [thread:$0]  %s0, 2048, %s26, [#allocation3], 128, 128, 8
    $region5: #{tpu_custom_call.1} parent=1 // pred_fallthru
      _
    // Predicated region
    $region6: #{tpu_custom_call.1} parent=1 // pred_check
      _
    $region7: #{tpu_custom_call.1} parent=1 // pred_check_branch
      %33 = sbr.rel (0) target = $region9
    $region8: #{tpu_custom_call.1} parent=1 // pred_region
      %s35 = ssub.s32 2048, 2048
      %36 = vsyncadd [#allocation6], %s35
      %s37 = sshll.u32 [#allocation5], 4
      %s38 = int_to_ptr.vmem [resolvable:$true] %s37
      %43 = dma.hbm_to_vmem [thread:$0]  %s1, 2048, %s38, [#allocation6], 128, 128, 8
    $region9: #{tpu_custom_call.1} parent=1 // pred_fallthru
      _
    // Predicated region
    $region10: #{tpu_custom_call.1} parent=1 // pred_check
      _
    $region11: #{tpu_custom_call.1} parent=1 // pred_check_branch
      %45 = sbr.rel (0) target = $region13
    $region12: #{tpu_custom_call.1} parent=1 // pred_region
      %s47 = ssub.s32 2048, 2048
      %48 = vsyncadd [#allocation6], %s47
      %s49 = sshll.u32 [#allocation7], 4
      %s50 = int_to_ptr.vmem [resolvable:$true] %s49
      %55 = dma.hbm_to_vmem [thread:$0]  %s2, 2048, %s50, [#allocation6], 128, 128, 8
    $region13: #{tpu_custom_call.1} parent=1 // pred_fallthru
      _
    // Predicated region
    $region14: #{tpu_custom_call.1} parent=1 // pred_check
      _
    $region15: #{tpu_custom_call.1} parent=1 // pred_check_branch
      %57 = sbr.rel (0) target = $region17
    $region16: #{tpu_custom_call.1} parent=1 // pred_region
      _
    $region17: #{tpu_custom_call.1} parent=1 // pred_fallthru
      _
    // Predicated region
    $region18: #{tpu_custom_call.1} parent=1 // pred_check
      _
    $region19: #{tpu_custom_call.1} parent=1 // pred_check_branch
      %59 = sbr.rel (0) target = $region21
    $region20: #{tpu_custom_call.1} parent=1 // pred_region
      _
    $region21: #{tpu_custom_call.1} parent=1 // pred_fallthru
      _
    // Predicated region
    $region22: #{tpu_custom_call.1} parent=1 // pred_check
      _
    $region23: #{tpu_custom_call.1} parent=1 // pred_check_branch
      %61 = sbr.rel (0) target = $region25
    $region24: #{tpu_custom_call.1} parent=1 // pred_region
      %s63 = ssub.s32 2048, 2048
      %64 = vsyncadd [#allocation9], %s63
      %s65 = sshll.u32 [#allocation8], 4
      %s66 = int_to_ptr.vmem [resolvable:$true] %s65
      %71 = dma.hbm_to_vmem [thread:$0]  %s5, 2048, %s66, [#allocation9], 128, 128, 8
    $region25: #{tpu_custom_call.1} parent=1 // pred_fallthru
      _
    // Predicated region
    $region26: #{tpu_custom_call.1} parent=1 // pred_check
      _
    $region27: #{tpu_custom_call.1} parent=1 // pred_check_branch
      %73 = sbr.rel (0) target = $region29
    $region28: #{tpu_custom_call.1} parent=1 // pred_region
      _
    $region29: #{tpu_custom_call.1} parent=1 // pred_fallthru
      _
    // Predicated region
    $region30: #{tpu_custom_call.1} parent=1 // pred_check
      _
    $region31: #{tpu_custom_call.1} parent=1 // pred_check_branch
      %75 = sbr.rel (0) target = $region33
    $region32: #{tpu_custom_call.1} parent=1 // pred_region
      _
    $region33: #{tpu_custom_call.1} parent=1 // pred_fallthru
      _
    // Predicated region
    $region34: #{tpu_custom_call.1} parent=1 // pred_check
      _
    $region35: #{tpu_custom_call.1} parent=1 // pred_check_branch
      %77 = sbr.rel (0) target = $region37
    $region36: #{tpu_custom_call.1} parent=1 // pred_region
      %s79 = ssub.s32 2048, 2048
      %80 = vsyncadd [#allocation9], %s79
      %s81 = sshll.u32 [#allocation10], 4
      %s82 = int_to_ptr.vmem [resolvable:$true] %s81
      %87 = dma.hbm_to_vmem [thread:$0]  %s8, 2048, %s82, [#allocation9], 128, 128, 8
    $region37: #{tpu_custom_call.1} parent=1 // pred_fallthru
      _
    // Predicated region
    $region38: #{tpu_custom_call.1} parent=1 // pred_check
      _
    $region39: #{tpu_custom_call.1} parent=1 // pred_check_branch
      %89 = sbr.rel (0) target = $region41
    $region40: #{tpu_custom_call.1} parent=1 // pred_region
      _
    $region41: #{tpu_custom_call.1} parent=1 // pred_fallthru
      _
    // Predicated region
    $region42: #{tpu_custom_call.1} parent=1 // pred_check
      _
    $region43: #{tpu_custom_call.1} parent=1 // pred_check_branch
      %91 = sbr.rel (0) target = $region45
    $region44: #{tpu_custom_call.1} parent=1 // pred_region
      _
    $region45: #{tpu_custom_call.1} parent=1 // pred_fallthru
      _
    // Predicated region
    $region46: #{tpu_custom_call.1} parent=1 // pred_check
      _
    $region47: #{tpu_custom_call.1} parent=1 // pred_check_branch
      %93 = sbr.rel (0) target = $region49
    $region48: #{tpu_custom_call.1} parent=1 // pred_region
      %94 = dma.done [#allocation3], 2048
    $region49: #{tpu_custom_call.1} parent=1 // pred_fallthru
      _
    // Predicated region
    $region50: #{tpu_custom_call.1} parent=1 // pred_check
      _
    $region51: #{tpu_custom_call.1} parent=1 // pred_check_branch
      %96 = sbr.rel (0) target = $region53
    $region52: #{tpu_custom_call.1} parent=1 // pred_region
      %97 = dma.done [#allocation6], 2048
    $region53: #{tpu_custom_call.1} parent=1 // pred_fallthru
      _
    // Predicated region
    $region54: #{tpu_custom_call.1} parent=1 // pred_check
      _
    $region55: #{tpu_custom_call.1} parent=1 // pred_check_branch
      %99 = sbr.rel (0) target = $region57
    $region56: #{tpu_custom_call.1} parent=1 // pred_region
      %100 = dma.done [#allocation6], 2048
    $region57: #{tpu_custom_call.1} parent=1 // pred_fallthru
      _
    // Predicated region
    $region58: #{tpu_custom_call.1} parent=1 // pred_check
      _
    $region59: #{tpu_custom_call.1} parent=1 // pred_check_branch
      %102 = sbr.rel (0) target = $region61
    $region60: #{tpu_custom_call.1} parent=1 // pred_region
      %103 = dma.done [#allocation9], 2048
    $region61: #{tpu_custom_call.1} parent=1 // pred_fallthru
      _
    // Predicated region
    $region62: #{tpu_custom_call.1} parent=1 // pred_check
      _
    $region63: #{tpu_custom_call.1} parent=1 // pred_check_branch
      %105 = sbr.rel (0) target = $region65
    $region64: #{tpu_custom_call.1} parent=1 // pred_region
      %106 = dma.done [#allocation9], 2048
    $region65: #{tpu_custom_call.1} parent=1 // pred_fallthru
      _
    %v107 = vld [vmem:[#allocation2] sm:$0xff]
    %v108 = vld [vmem:[#allocation2 + $0x8] sm:$0xff]
    %v109 = vld [vmem:[#allocation2 + $0x10] sm:$0xff]
    %v110 = vld [vmem:[#allocation2 + $0x18] sm:$0xff]
    %v111 = vld [vmem:[#allocation2 + $0x20] sm:$0xff]
    %v112 = vld [vmem:[#allocation2 + $0x28] sm:$0xff]
    %v113 = vld [vmem:[#allocation2 + $0x30] sm:$0xff]
    %v114 = vld [vmem:[#allocation2 + $0x38] sm:$0xff]
    %v115 = vld [vmem:[#allocation2 + $0x40] sm:$0xff]
    %v116 = vld [vmem:[#allocation2 + $0x48] sm:$0xff]
    %v117 = vld [vmem:[#allocation2 + $0x50] sm:$0xff]
    %v118 = vld [vmem:[#allocation2 + $0x58] sm:$0xff]
    %v119 = vld [vmem:[#allocation2 + $0x60] sm:$0xff]
    %v120 = vld [vmem:[#allocation2 + $0x68] sm:$0xff]
    %v121 = vld [vmem:[#allocation2 + $0x70] sm:$0xff]
    %v122 = vld [vmem:[#allocation2 + $0x78] sm:$0xff]
    %v123 = vld [vmem:[#allocation5] sm:$0xff]
    %v124 = vld [vmem:[#allocation5 + $0x8] sm:$0xff]
    %v125 = vld [vmem:[#allocation5 + $0x10] sm:$0xff]
    %v126 = vld [vmem:[#allocation5 + $0x18] sm:$0xff]
    %v127 = vld [vmem:[#allocation5 + $0x20] sm:$0xff]
    %v128 = vld [vmem:[#allocation5 + $0x28] sm:$0xff]
    %v129 = vld [vmem:[#allocation5 + $0x30] sm:$0xff]
    %v130 = vld [vmem:[#allocation5 + $0x38] sm:$0xff]
    %v131 = vld [vmem:[#allocation5 + $0x40] sm:$0xff]
    %v132 = vld [vmem:[#allocation5 + $0x48] sm:$0xff]
    %v133 = vld [vmem:[#allocation5 + $0x50] sm:$0xff]
    %v134 = vld [vmem:[#allocation5 + $0x58] sm:$0xff]
    %v135 = vld [vmem:[#allocation5 + $0x60] sm:$0xff]
    %v136 = vld [vmem:[#allocation5 + $0x68] sm:$0xff]
    %v137 = vld [vmem:[#allocation5 + $0x70] sm:$0xff]
    %v138 = vld [vmem:[#allocation5 + $0x78] sm:$0xff]
    %v139 = vld [vmem:[#allocation7] sm:$0xff]
    %v140 = vld [vmem:[#allocation7 + $0x8] sm:$0xff]
    %v141 = vld [vmem:[#allocation7 + $0x10] sm:$0xff]
    %v142 = vld [vmem:[#allocation7 + $0x18] sm:$0xff]
    %v143 = vld [vmem:[#allocation7 + $0x20] sm:$0xff]
    %v144 = vld [vmem:[#allocation7 + $0x28] sm:$0xff]
    %v145 = vld [vmem:[#allocation7 + $0x30] sm:$0xff]
    %v146 = vld [vmem:[#allocation7 + $0x38] sm:$0xff]
    %v147 = vld [vmem:[#allocation7 + $0x40] sm:$0xff]
    %v148 = vld [vmem:[#allocation7 + $0x48] sm:$0xff]
    %v149 = vld [vmem:[#allocation7 + $0x50] sm:$0xff]
    %v150 = vld [vmem:[#allocation7 + $0x58] sm:$0xff]
    %v151 = vld [vmem:[#allocation7 + $0x60] sm:$0xff]
    %v152 = vld [vmem:[#allocation7 + $0x68] sm:$0xff]
    %v153 = vld [vmem:[#allocation7 + $0x70] sm:$0xff]
    %v154 = vld [vmem:[#allocation7 + $0x78] sm:$0xff]
    %155 = vmatprep.subr.mxu0 0.0
    %156 = vmatpush1.msra.mxu0 %v139
    %157 = vmatprep.subr.mxu0 0.0
    %158 = vmatpush1.msra.mxu0 %v140
    %159 = vmatprep.subr.mxu0 0.0
    %160 = vmatpush1.msra.mxu0 %v141
    %161 = vmatprep.subr.mxu0 0.0
    %162 = vmatpush1.msra.mxu0 %v142
    %163 = vmatprep.subr.mxu0 0.0
    %164 = vmatpush1.msra.mxu0 %v143
    %165 = vmatprep.subr.mxu0 0.0
    %166 = vmatpush1.msra.mxu0 %v144
    %167 = vmatprep.subr.mxu0 0.0
    %168 = vmatpush1.msra.mxu0 %v145
    %169 = vmatprep.subr.mxu0 0.0
    %170 = vmatpush1.msra.mxu0 %v146
    %171 = vmatprep.subr.mxu0 0.0
    %172 = vmatpush1.msra.mxu0 %v147
    %173 = vmatprep.subr.mxu0 0.0
    %174 = vmatpush1.msra.mxu0 %v148
    %175 = vmatprep.subr.mxu0 0.0
    %176 = vmatpush1.msra.mxu0 %v149
    %177 = vmatprep.subr.mxu0 0.0
    %178 = vmatpush1.msra.mxu0 %v150
    %179 = vmatprep.subr.mxu0 0.0
    %180 = vmatpush1.msra.mxu0 %v151
    %181 = vmatprep.subr.mxu0 0.0
    %182 = vmatpush1.msra.mxu0 %v152
    %183 = vmatprep.subr.mxu0 0.0
    %184 = vmatpush1.msra.mxu0 %v153
    %185 = vmatprep.subr.mxu0 0.0
    %186 = vmatpush1.msra.mxu0 %v154
    %187 = vmatprep.subr.mxu0 0.0
    %188 = vmatpush1.msra.mxu0 0.0
    %189 = vmatprep.subr.mxu0 0.0
    %190 = vmatpush1.msra.mxu0 0.0
    %191 = vmatprep.subr.mxu0 0.0
    %192 = vmatpush1.msra.mxu0 0.0
    %193 = vmatprep.subr.mxu0 0.0
    %194 = vmatpush1.msra.mxu0 0.0
    %195 = vmatprep.subr.mxu0 0.0
    %196 = vmatpush1.msra.mxu0 0.0
    %197 = vmatprep.subr.mxu0 0.0
    %198 = vmatpush1.msra.mxu0 0.0
    %199 = vmatprep.subr.mxu0 0.0
    %200 = vmatpush1.msra.mxu0 0.0
    %201 = vmatprep.subr.mxu0 0.0
    %202 = vmatpush1.msra.mxu0 0.0
    %203 = vmatprep.subr.mxu0 0.0
    %204 = vmatpush1.msra.mxu0 0.0
    %205 = vmatprep.subr.mxu0 0.0
    %206 = vmatpush1.msra.mxu0 0.0
    %207 = vmatprep.subr.mxu0 0.0
    %208 = vmatpush1.msra.mxu0 0.0
    %209 = vmatprep.subr.mxu0 0.0
    %210 = vmatpush1.msra.mxu0 0.0
    %211 = vmatprep.subr.mxu0 0.0
    %212 = vmatpush1.msra.mxu0 0.0
    %213 = vmatprep.subr.mxu0 0.0
    %214 = vmatpush1.msra.mxu0 0.0
    %215 = vmatprep.subr.mxu0 0.0
    %216 = vmatpush1.msra.mxu0 0.0
    %217 = vmatprep.subr.mxu0 0.0
    %218 = vmatpush1.msra.mxu0 0.0
    %219 = vmatprep.mubr.f32.mxu0 0.0
    %220 = vmatmul.mubr.f32.gmra.mrb[0].mxu0 %v123
    %v221 = vpop.f32.mrb[0].mxu0
    %v222 = vadd.f32 0.0, %v221
    %v223 = vpop.f32.mrb[0].mxu0
    %224 = vmatprep.mubr.f32.mxu0 0.0
    %225 = vmatmul.mubr.f32.gmra.mrb[0].mxu0 %v124
    %v226 = vpop.f32.mrb[0].mxu0
    %v227 = vadd.f32 0.0, %v226
    %v228 = vpop.f32.mrb[0].mxu0
    %229 = vmatprep.mubr.f32.mxu0 0.0
    %230 = vmatmul.mubr.f32.gmra.mrb[0].mxu0 %v125
    %v231 = vpop.f32.mrb[0].mxu0
    %v232 = vadd.f32 0.0, %v231
    %v233 = vpop.f32.mrb[0].mxu0
    %234 = vmatprep.mubr.f32.mxu0 0.0
    %235 = vmatmul.mubr.f32.gmra.mrb[0].mxu0 %v126
    %v236 = vpop.f32.mrb[0].mxu0
    %v237 = vadd.f32 0.0, %v236
    %v238 = vpop.f32.mrb[0].mxu0
    %239 = vmatprep.mubr.f32.mxu0 0.0
    %240 = vmatmul.mubr.f32.gmra.mrb[0].mxu0 %v127
    %v241 = vpop.f32.mrb[0].mxu0
    %v242 = vadd.f32 0.0, %v241
    %v243 = vpop.f32.mrb[0].mxu0
    %244 = vmatprep.mubr.f32.mxu0 0.0
    %245 = vmatmul.mubr.f32.gmra.mrb[0].mxu0 %v128
    %v246 = vpop.f32.mrb[0].mxu0
    %v247 = vadd.f32 0.0, %v246
    %v248 = vpop.f32.mrb[0].mxu0
    %249 = vmatprep.mubr.f32.mxu0 0.0
    %250 = vmatmul.mubr.f32.gmra.mrb[0].mxu0 %v129
    %v251 = vpop.f32.mrb[0].mxu0
    %v252 = vadd.f32 0.0, %v251
    %v253 = vpop.f32.mrb[0].mxu0
    %254 = vmatprep.mubr.f32.mxu0 0.0
    %255 = vmatmul.mubr.f32.gmra.mrb[0].mxu0 %v130
    %v256 = vpop.f32.mrb[0].mxu0
    %v257 = vadd.f32 0.0, %v256
    %v258 = vpop.f32.mrb[0].mxu0
    %259 = vmatprep.mubr.f32.mxu0 0.0
    %260 = vmatmul.mubr.f32.gmra.mrb[0].mxu0 %v131
    %v261 = vpop.f32.mrb[0].mxu0
    %v262 = vadd.f32 0.0, %v261
    %v263 = vpop.f32.mrb[0].mxu0
    %264 = vmatprep.mubr.f32.mxu0 0.0
    %265 = vmatmul.mubr.f32.gmra.mrb[0].mxu0 %v132
    %v266 = vpop.f32.mrb[0].mxu0
    %v267 = vadd.f32 0.0, %v266
    %v268 = vpop.f32.mrb[0].mxu0
    %269 = vmatprep.mubr.f32.mxu0 0.0
    %270 = vmatmul.mubr.f32.gmra.mrb[0].mxu0 %v133
    %v271 = vpop.f32.mrb[0].mxu0
    %v272 = vadd.f32 0.0, %v271
    %v273 = vpop.f32.mrb[0].mxu0
    %274 = vmatprep.mubr.f32.mxu0 0.0
    %275 = vmatmul.mubr.f32.gmra.mrb[0].mxu0 %v134
    %v276 = vpop.f32.mrb[0].mxu0
    %v277 = vadd.f32 0.0, %v276
    %v278 = vpop.f32.mrb[0].mxu0
    %279 = vmatprep.mubr.f32.mxu0 0.0
    %280 = vmatmul.mubr.f32.gmra.mrb[0].mxu0 %v135
    %v281 = vpop.f32.mrb[0].mxu0
    %v282 = vadd.f32 0.0, %v281
    %v283 = vpop.f32.mrb[0].mxu0
    %284 = vmatprep.mubr.f32.mxu0 0.0
    %285 = vmatmul.mubr.f32.gmra.mrb[0].mxu0 %v136
    %v286 = vpop.f32.mrb[0].mxu0
    %v287 = vadd.f32 0.0, %v286
    %v288 = vpop.f32.mrb[0].mxu0
    %289 = vmatprep.mubr.f32.mxu0 0.0
    %290 = vmatmul.mubr.f32.gmra.mrb[0].mxu0 %v137
    %v291 = vpop.f32.mrb[0].mxu0
    %v292 = vadd.f32 0.0, %v291
    %v293 = vpop.f32.mrb[0].mxu0
    %294 = vmatprep.mubr.f32.mxu0 0.0
    %295 = vmatmul.mubr.f32.gmra.mrb[0].mxu0 %v138
    %v296 = vpop.f32.mrb[0].mxu0
    %v297 = vadd.f32 0.0, %v296
    %v298 = vpop.f32.mrb[0].mxu0
    %299 = vdwg.mxu0
    %300 = vmatprep.subr.mxu0 0.0
    %301 = vmatpush1.msra.mxu0 %v222
    %302 = vmatprep.subr.mxu0 0.0
    %303 = vmatpush1.msra.mxu0 %v227
    %304 = vmatprep.subr.mxu0 0.0
    %305 = vmatpush1.msra.mxu0 %v232
    %306 = vmatprep.subr.mxu0 0.0
    %307 = vmatpush1.msra.mxu0 %v237
    %308 = vmatprep.subr.mxu0 0.0
    %309 = vmatpush1.msra.mxu0 %v242
    %310 = vmatprep.subr.mxu0 0.0
    %311 = vmatpush1.msra.mxu0 %v247
    %312 = vmatprep.subr.mxu0 0.0
    %313 = vmatpush1.msra.mxu0 %v252
    %314 = vmatprep.subr.mxu0 0.0
    %315 = vmatpush1.msra.mxu0 %v257
    %316 = vmatprep.subr.mxu0 0.0
    %317 = vmatpush1.msra.mxu0 %v262
    %318 = vmatprep.subr.mxu0 0.0
    %319 = vmatpush1.msra.mxu0 %v267
    %320 = vmatprep.subr.mxu0 0.0
    %321 = vmatpush1.msra.mxu0 %v272
    %322 = vmatprep.subr.mxu0 0.0
    %323 = vmatpush1.msra.mxu0 %v277
    %324 = vmatprep.subr.mxu0 0.0
    %325 = vmatpush1.msra.mxu0 %v282
    %326 = vmatprep.subr.mxu0 0.0
    %327 = vmatpush1.msra.mxu0 %v287
    %328 = vmatprep.subr.mxu0 0.0
    %329 = vmatpush1.msra.mxu0 %v292
    %330 = vmatprep.subr.mxu0 0.0
    %331 = vmatpush1.msra.mxu0 %v297
    %332 = vmatprep.subr.mxu0 0.0
    %333 = vmatpush1.msra.mxu0 0.0
    %334 = vmatprep.subr.mxu0 0.0
    %335 = vmatpush1.msra.mxu0 0.0
    %336 = vmatprep.subr.mxu0 0.0
    %337 = vmatpush1.msra.mxu0 0.0
    %338 = vmatprep.subr.mxu0 0.0
    %339 = vmatpush1.msra.mxu0 0.0
    %340 = vmatprep.subr.mxu0 0.0
    %341 = vmatpush1.msra.mxu0 0.0
    %342 = vmatprep.subr.mxu0 0.0
    %343 = vmatpush1.msra.mxu0 0.0
    %344 = vmatprep.subr.mxu0 0.0
    %345 = vmatpush1.msra.mxu0 0.0
    %346 = vmatprep.subr.mxu0 0.0
    %347 = vmatpush1.msra.mxu0 0.0
    %348 = vmatprep.subr.mxu0 0.0
    %349 = vmatpush1.msra.mxu0 0.0
    %350 = vmatprep.subr.mxu0 0.0
    %351 = vmatpush1.msra.mxu0 0.0
    %352 = vmatprep.subr.mxu0 0.0
    %353 = vmatpush1.msra.mxu0 0.0
    %354 = vmatprep.subr.mxu0 0.0
    %355 = vmatpush1.msra.mxu0 0.0
    %356 = vmatprep.subr.mxu0 0.0
    %357 = vmatpush1.msra.mxu0 0.0
    %358 = vmatprep.subr.mxu0 0.0
    %359 = vmatpush1.msra.mxu0 0.0
    %360 = vmatprep.subr.mxu0 0.0
    %361 = vmatpush1.msra.mxu0 0.0
    %362 = vmatprep.subr.mxu0 0.0
    %363 = vmatpush1.msra.mxu0 0.0
    %364 = vmatprep.mubr.f32.mxu0 0.0
    %365 = vmatmul.mubr.f32.gmra.mrb[0].mxu0 %v107
    %v366 = vpop.f32.mrb[0].mxu0
    %v367 = vadd.f32 0.0, %v366
    %v368 = vpop.f32.mrb[0].mxu0
    %369 = vmatprep.mubr.f32.mxu0 0.0
    %370 = vmatmul.mubr.f32.gmra.mrb[0].mxu0 %v108
    %v371 = vpop.f32.mrb[0].mxu0
    %v372 = vadd.f32 0.0, %v371
    %v373 = vpop.f32.mrb[0].mxu0
    %374 = vmatprep.mubr.f32.mxu0 0.0
    %375 = vmatmul.mubr.f32.gmra.mrb[0].mxu0 %v109
    %v376 = vpop.f32.mrb[0].mxu0
    %v377 = vadd.f32 0.0, %v376
    %v378 = vpop.f32.mrb[0].mxu0
    %379 = vmatprep.mubr.f32.mxu0 0.0
    %380 = vmatmul.mubr.f32.gmra.mrb[0].mxu0 %v110
    %v381 = vpop.f32.mrb[0].mxu0
    %v382 = vadd.f32 0.0, %v381
    %v383 = vpop.f32.mrb[0].mxu0
    %384 = vmatprep.mubr.f32.mxu0 0.0
    %385 = vmatmul.mubr.f32.gmra.mrb[0].mxu0 %v111
    %v386 = vpop.f32.mrb[0].mxu0
    %v387 = vadd.f32 0.0, %v386
    %v388 = vpop.f32.mrb[0].mxu0
    %389 = vmatprep.mubr.f32.mxu0 0.0
    %390 = vmatmul.mubr.f32.gmra.mrb[0].mxu0 %v112
    %v391 = vpop.f32.mrb[0].mxu0
    %v392 = vadd.f32 0.0, %v391
    %v393 = vpop.f32.mrb[0].mxu0
    %394 = vmatprep.mubr.f32.mxu0 0.0
    %395 = vmatmul.mubr.f32.gmra.mrb[0].mxu0 %v113
    %v396 = vpop.f32.mrb[0].mxu0
    %v397 = vadd.f32 0.0, %v396
    %v398 = vpop.f32.mrb[0].mxu0
    %399 = vmatprep.mubr.f32.mxu0 0.0
    %400 = vmatmul.mubr.f32.gmra.mrb[0].mxu0 %v114
    %v401 = vpop.f32.mrb[0].mxu0
    %v402 = vadd.f32 0.0, %v401
    %v403 = vpop.f32.mrb[0].mxu0
    %404 = vmatprep.mubr.f32.mxu0 0.0
    %405 = vmatmul.mubr.f32.gmra.mrb[0].mxu0 %v115
    %v406 = vpop.f32.mrb[0].mxu0
    %v407 = vadd.f32 0.0, %v406
    %v408 = vpop.f32.mrb[0].mxu0
    %409 = vmatprep.mubr.f32.mxu0 0.0
    %410 = vmatmul.mubr.f32.gmra.mrb[0].mxu0 %v116
    %v411 = vpop.f32.mrb[0].mxu0
    %v412 = vadd.f32 0.0, %v411
    %v413 = vpop.f32.mrb[0].mxu0
    %414 = vmatprep.mubr.f32.mxu0 0.0
    %415 = vmatmul.mubr.f32.gmra.mrb[0].mxu0 %v117
    %v416 = vpop.f32.mrb[0].mxu0
    %v417 = vadd.f32 0.0, %v416
    %v418 = vpop.f32.mrb[0].mxu0
    %419 = vmatprep.mubr.f32.mxu0 0.0
    %420 = vmatmul.mubr.f32.gmra.mrb[0].mxu0 %v118
    %v421 = vpop.f32.mrb[0].mxu0
    %v422 = vadd.f32 0.0, %v421
    %v423 = vpop.f32.mrb[0].mxu0
    %424 = vmatprep.mubr.f32.mxu0 0.0
    %425 = vmatmul.mubr.f32.gmra.mrb[0].mxu0 %v119
    %v426 = vpop.f32.mrb[0].mxu0
    %v427 = vadd.f32 0.0, %v426
    %v428 = vpop.f32.mrb[0].mxu0
    %429 = vmatprep.mubr.f32.mxu0 0.0
    %430 = vmatmul.mubr.f32.gmra.mrb[0].mxu0 %v120
    %v431 = vpop.f32.mrb[0].mxu0
    %v432 = vadd.f32 0.0, %v431
    %v433 = vpop.f32.mrb[0].mxu0
    %434 = vmatprep.mubr.f32.mxu0 0.0
    %435 = vmatmul.mubr.f32.gmra.mrb[0].mxu0 %v121
    %v436 = vpop.f32.mrb[0].mxu0
    %v437 = vadd.f32 0.0, %v436
    %v438 = vpop.f32.mrb[0].mxu0
    %439 = vmatprep.mubr.f32.mxu0 0.0
    %440 = vmatmul.mubr.f32.gmra.mrb[0].mxu0 %v122
    %v441 = vpop.f32.mrb[0].mxu0
    %v442 = vadd.f32 0.0, %v441
    %v443 = vpop.f32.mrb[0].mxu0
    %444 = vdwg.mxu0
    %v445 = vld [vmem:[%s3] sm:$0x1]
    %v447 = vlaneseq
    %v448 = vshrl.u32 %v447, 7
    %v449 = vsub.s32 0, %v448
    %v450 = vrot.slane %v445, %v449
    %v452 = vmul.f32 %v367, %v450
    %v453 = vmul.f32 %v372, %v450
    %v454 = vmul.f32 %v377, %v450
    %v455 = vmul.f32 %v382, %v450
    %v456 = vmul.f32 %v387, %v450
    %v457 = vmul.f32 %v392, %v450
    %v458 = vmul.f32 %v397, %v450
    %v459 = vmul.f32 %v402, %v450
    %v460 = vmul.f32 %v407, %v450
    %v461 = vmul.f32 %v412, %v450
    %v462 = vmul.f32 %v417, %v450
    %v463 = vmul.f32 %v422, %v450
    %v464 = vmul.f32 %v427, %v450
    %v465 = vmul.f32 %v432, %v450
    %v466 = vmul.f32 %v437, %v450
    %v467 = vmul.f32 %v442, %v450
    %v468 = vld [vmem:[%s4] sm:$0x1]
    %v470 = vlaneseq
    %v471 = vshrl.u32 %v470, 7
    %v472 = vsub.s32 0, %v471
    %v473 = vrot.slane %v468, %v472
    %v475 = vadd.f32 %v452, %v473
    %v476 = vadd.f32 %v453, %v473
    %v477 = vadd.f32 %v454, %v473
    %v478 = vadd.f32 %v455, %v473
    %v479 = vadd.f32 %v456, %v473
    %v480 = vadd.f32 %v457, %v473
    %v481 = vadd.f32 %v458, %v473
    %v482 = vadd.f32 %v459, %v473
    %v483 = vadd.f32 %v460, %v473
    %v484 = vadd.f32 %v461, %v473
    %v485 = vadd.f32 %v462, %v473
    %v486 = vadd.f32 %v463, %v473
    %v487 = vadd.f32 %v464, %v473
    %v488 = vadd.f32 %v465, %v473
    %v489 = vadd.f32 %v466, %v473
    %v490 = vadd.f32 %v467, %v473
    %v491 = vmax.f32 %v475, 0.0
    %v492 = vmax.f32 %v476, 0.0
    %v493 = vmax.f32 %v477, 0.0
    %v494 = vmax.f32 %v478, 0.0
    %v495 = vmax.f32 %v479, 0.0
    %v496 = vmax.f32 %v480, 0.0
    %v497 = vmax.f32 %v481, 0.0
    %v498 = vmax.f32 %v482, 0.0
    %v499 = vmax.f32 %v483, 0.0
    %v500 = vmax.f32 %v484, 0.0
    %v501 = vmax.f32 %v485, 0.0
    %v502 = vmax.f32 %v486, 0.0
    %v503 = vmax.f32 %v487, 0.0
    %v504 = vmax.f32 %v488, 0.0
    %v505 = vmax.f32 %v489, 0.0
    %v506 = vmax.f32 %v490, 0.0
    %v507 = vld [vmem:[#allocation8] sm:$0xff]
    %v508 = vld [vmem:[#allocation8 + $0x8] sm:$0xff]
    %v509 = vld [vmem:[#allocation8 + $0x10] sm:$0xff]
    %v510 = vld [vmem:[#allocation8 + $0x18] sm:$0xff]
    %v511 = vld [vmem:[#allocation8 + $0x20] sm:$0xff]
    %v512 = vld [vmem:[#allocation8 + $0x28] sm:$0xff]
    %v513 = vld [vmem:[#allocation8 + $0x30] sm:$0xff]
    %v514 = vld [vmem:[#allocation8 + $0x38] sm:$0xff]
    %v515 = vld [vmem:[#allocation8 + $0x40] sm:$0xff]
    %v516 = vld [vmem:[#allocation8 + $0x48] sm:$0xff]
    %v517 = vld [vmem:[#allocation8 + $0x50] sm:$0xff]
    %v518 = vld [vmem:[#allocation8 + $0x58] sm:$0xff]
    %v519 = vld [vmem:[#allocation8 + $0x60] sm:$0xff]
    %v520 = vld [vmem:[#allocation8 + $0x68] sm:$0xff]
    %v521 = vld [vmem:[#allocation8 + $0x70] sm:$0xff]
    %v522 = vld [vmem:[#allocation8 + $0x78] sm:$0xff]
    %523 = vmatprep.subr.mxu0 0.0
    %524 = vmatpush1.msra.mxu0 %v507
    %525 = vmatprep.subr.mxu0 0.0
    %526 = vmatpush1.msra.mxu0 %v508
    %527 = vmatprep.subr.mxu0 0.0
    %528 = vmatpush1.msra.mxu0 %v509
    %529 = vmatprep.subr.mxu0 0.0
    %530 = vmatpush1.msra.mxu0 %v510
    %531 = vmatprep.subr.mxu0 0.0
    %532 = vmatpush1.msra.mxu0 %v511
    %533 = vmatprep.subr.mxu0 0.0
    %534 = vmatpush1.msra.mxu0 %v512
    %535 = vmatprep.subr.mxu0 0.0
    %536 = vmatpush1.msra.mxu0 %v513
    %537 = vmatprep.subr.mxu0 0.0
    %538 = vmatpush1.msra.mxu0 %v514
    %539 = vmatprep.subr.mxu0 0.0
    %540 = vmatpush1.msra.mxu0 %v515
    %541 = vmatprep.subr.mxu0 0.0
    %542 = vmatpush1.msra.mxu0 %v516
    %543 = vmatprep.subr.mxu0 0.0
    %544 = vmatpush1.msra.mxu0 %v517
    %545 = vmatprep.subr.mxu0 0.0
    %546 = vmatpush1.msra.mxu0 %v518
    %547 = vmatprep.subr.mxu0 0.0
    %548 = vmatpush1.msra.mxu0 %v519
    %549 = vmatprep.subr.mxu0 0.0
    %550 = vmatpush1.msra.mxu0 %v520
    %551 = vmatprep.subr.mxu0 0.0
    %552 = vmatpush1.msra.mxu0 %v521
    %553 = vmatprep.subr.mxu0 0.0
    %554 = vmatpush1.msra.mxu0 %v522
    %555 = vmatprep.subr.mxu0 0.0
    %556 = vmatpush1.msra.mxu0 0.0
    %557 = vmatprep.subr.mxu0 0.0
    %558 = vmatpush1.msra.mxu0 0.0
    %559 = vmatprep.subr.mxu0 0.0
    %560 = vmatpush1.msra.mxu0 0.0
    %561 = vmatprep.subr.mxu0 0.0
    %562 = vmatpush1.msra.mxu0 0.0
    %563 = vmatprep.subr.mxu0 0.0
    %564 = vmatpush1.msra.mxu0 0.0
    %565 = vmatprep.subr.mxu0 0.0
    %566 = vmatpush1.msra.mxu0 0.0
    %567 = vmatprep.subr.mxu0 0.0
    %568 = vmatpush1.msra.mxu0 0.0
    %569 = vmatprep.subr.mxu0 0.0
    %570 = vmatpush1.msra.mxu0 0.0
    %571 = vmatprep.subr.mxu0 0.0
    %572 = vmatpush1.msra.mxu0 0.0
    %573 = vmatprep.subr.mxu0 0.0
    %574 = vmatpush1.msra.mxu0 0.0
    %575 = vmatprep.subr.mxu0 0.0
    %576 = vmatpush1.msra.mxu0 0.0
    %577 = vmatprep.subr.mxu0 0.0
    %578 = vmatpush1.msra.mxu0 0.0
    %579 = vmatprep.subr.mxu0 0.0
    %580 = vmatpush1.msra.mxu0 0.0
    %581 = vmatprep.subr.mxu0 0.0
    %582 = vmatpush1.msra.mxu0 0.0
    %583 = vmatprep.subr.mxu0 0.0
    %584 = vmatpush1.msra.mxu0 0.0
    %585 = vmatprep.subr.mxu0 0.0
    %586 = vmatpush1.msra.mxu0 0.0
    %587 = vmatprep.mubr.f32.mxu0 0.0
    %588 = vmatmul.mubr.f32.gmra.mrb[0].mxu0 %v491
    %v589 = vpop.f32.mrb[0].mxu0
    %v590 = vadd.f32 0.0, %v589
    %v591 = vpop.f32.mrb[0].mxu0
    %592 = vmatprep.mubr.f32.mxu0 0.0
    %593 = vmatmul.mubr.f32.gmra.mrb[0].mxu0 %v492
    %v594 = vpop.f32.mrb[0].mxu0
    %v595 = vadd.f32 0.0, %v594
    %v596 = vpop.f32.mrb[0].mxu0
    %597 = vmatprep.mubr.f32.mxu0 0.0
    %598 = vmatmul.mubr.f32.gmra.mrb[0].mxu0 %v493
    %v599 = vpop.f32.mrb[0].mxu0
    %v600 = vadd.f32 0.0, %v599
    %v601 = vpop.f32.mrb[0].mxu0
    %602 = vmatprep.mubr.f32.mxu0 0.0
    %603 = vmatmul.mubr.f32.gmra.mrb[0].mxu0 %v494
    %v604 = vpop.f32.mrb[0].mxu0
    %v605 = vadd.f32 0.0, %v604
    %v606 = vpop.f32.mrb[0].mxu0
    %607 = vmatprep.mubr.f32.mxu0 0.0
    %608 = vmatmul.mubr.f32.gmra.mrb[0].mxu0 %v495
    %v609 = vpop.f32.mrb[0].mxu0
    %v610 = vadd.f32 0.0, %v609
    %v611 = vpop.f32.mrb[0].mxu0
    %612 = vmatprep.mubr.f32.mxu0 0.0
    %613 = vmatmul.mubr.f32.gmra.mrb[0].mxu0 %v496
    %v614 = vpop.f32.mrb[0].mxu0
    %v615 = vadd.f32 0.0, %v614
    %v616 = vpop.f32.mrb[0].mxu0
    %617 = vmatprep.mubr.f32.mxu0 0.0
    %618 = vmatmul.mubr.f32.gmra.mrb[0].mxu0 %v497
    %v619 = vpop.f32.mrb[0].mxu0
    %v620 = vadd.f32 0.0, %v619
    %v621 = vpop.f32.mrb[0].mxu0
    %622 = vmatprep.mubr.f32.mxu0 0.0
    %623 = vmatmul.mubr.f32.gmra.mrb[0].mxu0 %v498
    %v624 = vpop.f32.mrb[0].mxu0
    %v625 = vadd.f32 0.0, %v624
    %v626 = vpop.f32.mrb[0].mxu0
    %627 = vmatprep.mubr.f32.mxu0 0.0
    %628 = vmatmul.mubr.f32.gmra.mrb[0].mxu0 %v499
    %v629 = vpop.f32.mrb[0].mxu0
    %v630 = vadd.f32 0.0, %v629
    %v631 = vpop.f32.mrb[0].mxu0
    %632 = vmatprep.mubr.f32.mxu0 0.0
    %633 = vmatmul.mubr.f32.gmra.mrb[0].mxu0 %v500
    %v634 = vpop.f32.mrb[0].mxu0
    %v635 = vadd.f32 0.0, %v634
    %v636 = vpop.f32.mrb[0].mxu0
    %637 = vmatprep.mubr.f32.mxu0 0.0
    %638 = vmatmul.mubr.f32.gmra.mrb[0].mxu0 %v501
    %v639 = vpop.f32.mrb[0].mxu0
    %v640 = vadd.f32 0.0, %v639
    %v641 = vpop.f32.mrb[0].mxu0
    %642 = vmatprep.mubr.f32.mxu0 0.0
    %643 = vmatmul.mubr.f32.gmra.mrb[0].mxu0 %v502
    %v644 = vpop.f32.mrb[0].mxu0
    %v645 = vadd.f32 0.0, %v644
    %v646 = vpop.f32.mrb[0].mxu0
    %647 = vmatprep.mubr.f32.mxu0 0.0
    %648 = vmatmul.mubr.f32.gmra.mrb[0].mxu0 %v503
    %v649 = vpop.f32.mrb[0].mxu0
    %v650 = vadd.f32 0.0, %v649
    %v651 = vpop.f32.mrb[0].mxu0
    %652 = vmatprep.mubr.f32.mxu0 0.0
    %653 = vmatmul.mubr.f32.gmra.mrb[0].mxu0 %v504
    %v654 = vpop.f32.mrb[0].mxu0
    %v655 = vadd.f32 0.0, %v654
    %v656 = vpop.f32.mrb[0].mxu0
    %657 = vmatprep.mubr.f32.mxu0 0.0
    %658 = vmatmul.mubr.f32.gmra.mrb[0].mxu0 %v505
    %v659 = vpop.f32.mrb[0].mxu0
    %v660 = vadd.f32 0.0, %v659
    %v661 = vpop.f32.mrb[0].mxu0
    %662 = vmatprep.mubr.f32.mxu0 0.0
    %663 = vmatmul.mubr.f32.gmra.mrb[0].mxu0 %v506
    %v664 = vpop.f32.mrb[0].mxu0
    %v665 = vadd.f32 0.0, %v664
    %v666 = vpop.f32.mrb[0].mxu0
    %667 = vdwg.mxu0
    %668 = vmatprep.subr.mxu0 0.0
    %669 = vmatpush1.msra.mxu0 %v590
    %670 = vmatprep.subr.mxu0 0.0
    %671 = vmatpush1.msra.mxu0 %v595
    %672 = vmatprep.subr.mxu0 0.0
    %673 = vmatpush1.msra.mxu0 %v600
    %674 = vmatprep.subr.mxu0 0.0
    %675 = vmatpush1.msra.mxu0 %v605
    %676 = vmatprep.subr.mxu0 0.0
    %677 = vmatpush1.msra.mxu0 %v610
    %678 = vmatprep.subr.mxu0 0.0
    %679 = vmatpush1.msra.mxu0 %v615
    %680 = vmatprep.subr.mxu0 0.0
    %681 = vmatpush1.msra.mxu0 %v620
    %682 = vmatprep.subr.mxu0 0.0
    %683 = vmatpush1.msra.mxu0 %v625
    %684 = vmatprep.subr.mxu0 0.0
    %685 = vmatpush1.msra.mxu0 %v630
    %686 = vmatprep.subr.mxu0 0.0
    %687 = vmatpush1.msra.mxu0 %v635
    %688 = vmatprep.subr.mxu0 0.0
    %689 = vmatpush1.msra.mxu0 %v640
    %690 = vmatprep.subr.mxu0 0.0
    %691 = vmatpush1.msra.mxu0 %v645
    %692 = vmatprep.subr.mxu0 0.0
    %693 = vmatpush1.msra.mxu0 %v650
    %694 = vmatprep.subr.mxu0 0.0
    %695 = vmatpush1.msra.mxu0 %v655
    %696 = vmatprep.subr.mxu0 0.0
    %697 = vmatpush1.msra.mxu0 %v660
    %698 = vmatprep.subr.mxu0 0.0
    %699 = vmatpush1.msra.mxu0 %v665
    %700 = vmatprep.subr.mxu0 0.0
    %701 = vmatpush1.msra.mxu0 0.0
    %702 = vmatprep.subr.mxu0 0.0
    %703 = vmatpush1.msra.mxu0 0.0
    %704 = vmatprep.subr.mxu0 0.0
    %705 = vmatpush1.msra.mxu0 0.0
    %706 = vmatprep.subr.mxu0 0.0
    %707 = vmatpush1.msra.mxu0 0.0
    %708 = vmatprep.subr.mxu0 0.0
    %709 = vmatpush1.msra.mxu0 0.0
    %710 = vmatprep.subr.mxu0 0.0
    %711 = vmatpush1.msra.mxu0 0.0
    %712 = vmatprep.subr.mxu0 0.0
    %713 = vmatpush1.msra.mxu0 0.0
    %714 = vmatprep.subr.mxu0 0.0
    %715 = vmatpush1.msra.mxu0 0.0
    %716 = vmatprep.subr.mxu0 0.0
    %717 = vmatpush1.msra.mxu0 0.0
    %718 = vmatprep.subr.mxu0 0.0
    %719 = vmatpush1.msra.mxu0 0.0
    %720 = vmatprep.subr.mxu0 0.0
    %721 = vmatpush1.msra.mxu0 0.0
    %722 = vmatprep.subr.mxu0 0.0
    %723 = vmatpush1.msra.mxu0 0.0
    %724 = vmatprep.subr.mxu0 0.0
    %725 = vmatpush1.msra.mxu0 0.0
    %726 = vmatprep.subr.mxu0 0.0
    %727 = vmatpush1.msra.mxu0 0.0
    %728 = vmatprep.subr.mxu0 0.0
    %729 = vmatpush1.msra.mxu0 0.0
    %730 = vmatprep.subr.mxu0 0.0
    %731 = vmatpush1.msra.mxu0 0.0
    %732 = vmatprep.mubr.f32.mxu0 0.0
    %733 = vmatmul.mubr.f32.gmra.mrb[0].mxu0 %v107
    %v734 = vpop.f32.mrb[0].mxu0
    %v735 = vadd.f32 0.0, %v734
    %v736 = vpop.f32.mrb[0].mxu0
    %737 = vmatprep.mubr.f32.mxu0 0.0
    %738 = vmatmul.mubr.f32.gmra.mrb[0].mxu0 %v108
    %v739 = vpop.f32.mrb[0].mxu0
    %v740 = vadd.f32 0.0, %v739
    %v741 = vpop.f32.mrb[0].mxu0
    %742 = vmatprep.mubr.f32.mxu0 0.0
    %743 = vmatmul.mubr.f32.gmra.mrb[0].mxu0 %v109
    %v744 = vpop.f32.mrb[0].mxu0
    %v745 = vadd.f32 0.0, %v744
    %v746 = vpop.f32.mrb[0].mxu0
    %747 = vmatprep.mubr.f32.mxu0 0.0
    %748 = vmatmul.mubr.f32.gmra.mrb[0].mxu0 %v110
    %v749 = vpop.f32.mrb[0].mxu0
    %v750 = vadd.f32 0.0, %v749
    %v751 = vpop.f32.mrb[0].mxu0
    %752 = vmatprep.mubr.f32.mxu0 0.0
    %753 = vmatmul.mubr.f32.gmra.mrb[0].mxu0 %v111
    %v754 = vpop.f32.mrb[0].mxu0
    %v755 = vadd.f32 0.0, %v754
    %v756 = vpop.f32.mrb[0].mxu0
    %757 = vmatprep.mubr.f32.mxu0 0.0
    %758 = vmatmul.mubr.f32.gmra.mrb[0].mxu0 %v112
    %v759 = vpop.f32.mrb[0].mxu0
    %v760 = vadd.f32 0.0, %v759
    %v761 = vpop.f32.mrb[0].mxu0
    %762 = vmatprep.mubr.f32.mxu0 0.0
    %763 = vmatmul.mubr.f32.gmra.mrb[0].mxu0 %v113
    %v764 = vpop.f32.mrb[0].mxu0
    %v765 = vadd.f32 0.0, %v764
    %v766 = vpop.f32.mrb[0].mxu0
    %767 = vmatprep.mubr.f32.mxu0 0.0
    %768 = vmatmul.mubr.f32.gmra.mrb[0].mxu0 %v114
    %v769 = vpop.f32.mrb[0].mxu0
    %v770 = vadd.f32 0.0, %v769
    %v771 = vpop.f32.mrb[0].mxu0
    %772 = vmatprep.mubr.f32.mxu0 0.0
    %773 = vmatmul.mubr.f32.gmra.mrb[0].mxu0 %v115
    %v774 = vpop.f32.mrb[0].mxu0
    %v775 = vadd.f32 0.0, %v774
    %v776 = vpop.f32.mrb[0].mxu0
    %777 = vmatprep.mubr.f32.mxu0 0.0
    %778 = vmatmul.mubr.f32.gmra.mrb[0].mxu0 %v116
    %v779 = vpop.f32.mrb[0].mxu0
    %v780 = vadd.f32 0.0, %v779
    %v781 = vpop.f32.mrb[0].mxu0
    %782 = vmatprep.mubr.f32.mxu0 0.0
    %783 = vmatmul.mubr.f32.gmra.mrb[0].mxu0 %v117
    %v784 = vpop.f32.mrb[0].mxu0
    %v785 = vadd.f32 0.0, %v784
    %v786 = vpop.f32.mrb[0].mxu0
    %787 = vmatprep.mubr.f32.mxu0 0.0
    %788 = vmatmul.mubr.f32.gmra.mrb[0].mxu0 %v118
    %v789 = vpop.f32.mrb[0].mxu0
    %v790 = vadd.f32 0.0, %v789
    %v791 = vpop.f32.mrb[0].mxu0
    %792 = vmatprep.mubr.f32.mxu0 0.0
    %793 = vmatmul.mubr.f32.gmra.mrb[0].mxu0 %v119
    %v794 = vpop.f32.mrb[0].mxu0
    %v795 = vadd.f32 0.0, %v794
    %v796 = vpop.f32.mrb[0].mxu0
    %797 = vmatprep.mubr.f32.mxu0 0.0
    %798 = vmatmul.mubr.f32.gmra.mrb[0].mxu0 %v120
    %v799 = vpop.f32.mrb[0].mxu0
    %v800 = vadd.f32 0.0, %v799
    %v801 = vpop.f32.mrb[0].mxu0
    %802 = vmatprep.mubr.f32.mxu0 0.0
    %803 = vmatmul.mubr.f32.gmra.mrb[0].mxu0 %v121
    %v804 = vpop.f32.mrb[0].mxu0
    %v805 = vadd.f32 0.0, %v804
    %v806 = vpop.f32.mrb[0].mxu0
    %807 = vmatprep.mubr.f32.mxu0 0.0
    %808 = vmatmul.mubr.f32.gmra.mrb[0].mxu0 %v122
    %v809 = vpop.f32.mrb[0].mxu0
    %v810 = vadd.f32 0.0, %v809
    %v811 = vpop.f32.mrb[0].mxu0
    %812 = vdwg.mxu0
    %v813 = vld [vmem:[%s6] sm:$0x1]
    %v815 = vlaneseq
    %v816 = vshrl.u32 %v815, 7
    %v817 = vsub.s32 0, %v816
    %v818 = vrot.slane %v813, %v817
    %v820 = vmul.f32 %v735, %v818
    %v821 = vmul.f32 %v740, %v818
    %v822 = vmul.f32 %v745, %v818
    %v823 = vmul.f32 %v750, %v818
    %v824 = vmul.f32 %v755, %v818
    %v825 = vmul.f32 %v760, %v818
    %v826 = vmul.f32 %v765, %v818
    %v827 = vmul.f32 %v770, %v818
    %v828 = vmul.f32 %v775, %v818
    %v829 = vmul.f32 %v780, %v818
    %v830 = vmul.f32 %v785, %v818
    %v831 = vmul.f32 %v790, %v818
    %v832 = vmul.f32 %v795, %v818
    %v833 = vmul.f32 %v800, %v818
    %v834 = vmul.f32 %v805, %v818
    %v835 = vmul.f32 %v810, %v818
    %v836 = vld [vmem:[%s7] sm:$0x1]
    %v838 = vlaneseq
    %v839 = vshrl.u32 %v838, 7
    %v840 = vsub.s32 0, %v839
    %v841 = vrot.slane %v836, %v840
    %v843 = vadd.f32 %v820, %v841
    %v844 = vadd.f32 %v821, %v841
    %v845 = vadd.f32 %v822, %v841
    %v846 = vadd.f32 %v823, %v841
    %v847 = vadd.f32 %v824, %v841
    %v848 = vadd.f32 %v825, %v841
    %v849 = vadd.f32 %v826, %v841
    %v850 = vadd.f32 %v827, %v841
    %v851 = vadd.f32 %v828, %v841
    %v852 = vadd.f32 %v829, %v841
    %v853 = vadd.f32 %v830, %v841
    %v854 = vadd.f32 %v831, %v841
    %v855 = vadd.f32 %v832, %v841
    %v856 = vadd.f32 %v833, %v841
    %v857 = vadd.f32 %v834, %v841
    %v858 = vadd.f32 %v835, %v841
    %v859 = vmax.f32 %v843, 0.0
    %v860 = vmax.f32 %v844, 0.0
    %v861 = vmax.f32 %v845, 0.0
    %v862 = vmax.f32 %v846, 0.0
    %v863 = vmax.f32 %v847, 0.0
    %v864 = vmax.f32 %v848, 0.0
    %v865 = vmax.f32 %v849, 0.0
    %v866 = vmax.f32 %v850, 0.0
    %v867 = vmax.f32 %v851, 0.0
    %v868 = vmax.f32 %v852, 0.0
    %v869 = vmax.f32 %v853, 0.0
    %v870 = vmax.f32 %v854, 0.0
    %v871 = vmax.f32 %v855, 0.0
    %v872 = vmax.f32 %v856, 0.0
    %v873 = vmax.f32 %v857, 0.0
    %v874 = vmax.f32 %v858, 0.0
    %v875 = vld [vmem:[#allocation10] sm:$0xff]
    %v876 = vld [vmem:[#allocation10 + $0x8] sm:$0xff]
    %v877 = vld [vmem:[#allocation10 + $0x10] sm:$0xff]
    %v878 = vld [vmem:[#allocation10 + $0x18] sm:$0xff]
    %v879 = vld [vmem:[#allocation10 + $0x20] sm:$0xff]
    %v880 = vld [vmem:[#allocation10 + $0x28] sm:$0xff]
    %v881 = vld [vmem:[#allocation10 + $0x30] sm:$0xff]
    %v882 = vld [vmem:[#allocation10 + $0x38] sm:$0xff]
    %v883 = vld [vmem:[#allocation10 + $0x40] sm:$0xff]
    %v884 = vld [vmem:[#allocation10 + $0x48] sm:$0xff]
    %v885 = vld [vmem:[#allocation10 + $0x50] sm:$0xff]
    %v886 = vld [vmem:[#allocation10 + $0x58] sm:$0xff]
    %v887 = vld [vmem:[#allocation10 + $0x60] sm:$0xff]
    %v888 = vld [vmem:[#allocation10 + $0x68] sm:$0xff]
    %v889 = vld [vmem:[#allocation10 + $0x70] sm:$0xff]
    %v890 = vld [vmem:[#allocation10 + $0x78] sm:$0xff]
    %891 = vmatprep.subr.mxu0 0.0
    %892 = vmatpush1.msra.mxu0 %v875
    %893 = vmatprep.subr.mxu0 0.0
    %894 = vmatpush1.msra.mxu0 %v876
    %895 = vmatprep.subr.mxu0 0.0
    %896 = vmatpush1.msra.mxu0 %v877
    %897 = vmatprep.subr.mxu0 0.0
    %898 = vmatpush1.msra.mxu0 %v878
    %899 = vmatprep.subr.mxu0 0.0
    %900 = vmatpush1.msra.mxu0 %v879
    %901 = vmatprep.subr.mxu0 0.0
    %902 = vmatpush1.msra.mxu0 %v880
    %903 = vmatprep.subr.mxu0 0.0
    %904 = vmatpush1.msra.mxu0 %v881
    %905 = vmatprep.subr.mxu0 0.0
    %906 = vmatpush1.msra.mxu0 %v882
    %907 = vmatprep.subr.mxu0 0.0
    %908 = vmatpush1.msra.mxu0 %v883
    %909 = vmatprep.subr.mxu0 0.0
    %910 = vmatpush1.msra.mxu0 %v884
    %911 = vmatprep.subr.mxu0 0.0
    %912 = vmatpush1.msra.mxu0 %v885
    %913 = vmatprep.subr.mxu0 0.0
    %914 = vmatpush1.msra.mxu0 %v886
    %915 = vmatprep.subr.mxu0 0.0
    %916 = vmatpush1.msra.mxu0 %v887
    %917 = vmatprep.subr.mxu0 0.0
    %918 = vmatpush1.msra.mxu0 %v888
    %919 = vmatprep.subr.mxu0 0.0
    %920 = vmatpush1.msra.mxu0 %v889
    %921 = vmatprep.subr.mxu0 0.0
    %922 = vmatpush1.msra.mxu0 %v890
    %923 = vmatprep.subr.mxu0 0.0
    %924 = vmatpush1.msra.mxu0 0.0
    %925 = vmatprep.subr.mxu0 0.0
    %926 = vmatpush1.msra.mxu0 0.0
    %927 = vmatprep.subr.mxu0 0.0
    %928 = vmatpush1.msra.mxu0 0.0
    %929 = vmatprep.subr.mxu0 0.0
    %930 = vmatpush1.msra.mxu0 0.0
    %931 = vmatprep.subr.mxu0 0.0
    %932 = vmatpush1.msra.mxu0 0.0
    %933 = vmatprep.subr.mxu0 0.0
    %934 = vmatpush1.msra.mxu0 0.0
    %935 = vmatprep.subr.mxu0 0.0
    %936 = vmatpush1.msra.mxu0 0.0
    %937 = vmatprep.subr.mxu0 0.0
    %938 = vmatpush1.msra.mxu0 0.0
    %939 = vmatprep.subr.mxu0 0.0
    %940 = vmatpush1.msra.mxu0 0.0
    %941 = vmatprep.subr.mxu0 0.0
    %942 = vmatpush1.msra.mxu0 0.0
    %943 = vmatprep.subr.mxu0 0.0
    %944 = vmatpush1.msra.mxu0 0.0
    %945 = vmatprep.subr.mxu0 0.0
    %946 = vmatpush1.msra.mxu0 0.0
    %947 = vmatprep.subr.mxu0 0.0
    %948 = vmatpush1.msra.mxu0 0.0
    %949 = vmatprep.subr.mxu0 0.0
    %950 = vmatpush1.msra.mxu0 0.0
    %951 = vmatprep.subr.mxu0 0.0
    %952 = vmatpush1.msra.mxu0 0.0
    %953 = vmatprep.subr.mxu0 0.0
    %954 = vmatpush1.msra.mxu0 0.0
    %955 = vmatprep.mubr.f32.mxu0 0.0
    %956 = vmatmul.mubr.f32.gmra.mrb[0].mxu0 %v859
    %v957 = vpop.f32.mrb[0].mxu0
    %v958 = vadd.f32 0.0, %v957
    %v959 = vpop.f32.mrb[0].mxu0
    %960 = vmatprep.mubr.f32.mxu0 0.0
    %961 = vmatmul.mubr.f32.gmra.mrb[0].mxu0 %v860
    %v962 = vpop.f32.mrb[0].mxu0
    %v963 = vadd.f32 0.0, %v962
    %v964 = vpop.f32.mrb[0].mxu0
    %965 = vmatprep.mubr.f32.mxu0 0.0
    %966 = vmatmul.mubr.f32.gmra.mrb[0].mxu0 %v861
    %v967 = vpop.f32.mrb[0].mxu0
    %v968 = vadd.f32 0.0, %v967
    %v969 = vpop.f32.mrb[0].mxu0
    %970 = vmatprep.mubr.f32.mxu0 0.0
    %971 = vmatmul.mubr.f32.gmra.mrb[0].mxu0 %v862
    %v972 = vpop.f32.mrb[0].mxu0
    %v973 = vadd.f32 0.0, %v972
    %v974 = vpop.f32.mrb[0].mxu0
    %975 = vmatprep.mubr.f32.mxu0 0.0
    %976 = vmatmul.mubr.f32.gmra.mrb[0].mxu0 %v863
    %v977 = vpop.f32.mrb[0].mxu0
    %v978 = vadd.f32 0.0, %v977
    %v979 = vpop.f32.mrb[0].mxu0
    %980 = vmatprep.mubr.f32.mxu0 0.0
    %981 = vmatmul.mubr.f32.gmra.mrb[0].mxu0 %v864
    %v982 = vpop.f32.mrb[0].mxu0
    %v983 = vadd.f32 0.0, %v982
    %v984 = vpop.f32.mrb[0].mxu0
    %985 = vmatprep.mubr.f32.mxu0 0.0
    %986 = vmatmul.mubr.f32.gmra.mrb[0].mxu0 %v865
    %v987 = vpop.f32.mrb[0].mxu0
    %v988 = vadd.f32 0.0, %v987
    %v989 = vpop.f32.mrb[0].mxu0
    %990 = vmatprep.mubr.f32.mxu0 0.0
    %991 = vmatmul.mubr.f32.gmra.mrb[0].mxu0 %v866
    %v992 = vpop.f32.mrb[0].mxu0
    %v993 = vadd.f32 0.0, %v992
    %v994 = vpop.f32.mrb[0].mxu0
    %995 = vmatprep.mubr.f32.mxu0 0.0
    %996 = vmatmul.mubr.f32.gmra.mrb[0].mxu0 %v867
    %v997 = vpop.f32.mrb[0].mxu0
    %v998 = vadd.f32 0.0, %v997
    %v999 = vpop.f32.mrb[0].mxu0
    %1000 = vmatprep.mubr.f32.mxu0 0.0
    %1001 = vmatmul.mubr.f32.gmra.mrb[0].mxu0 %v868
    %v1002 = vpop.f32.mrb[0].mxu0
    %v1003 = vadd.f32 0.0, %v1002
    %v1004 = vpop.f32.mrb[0].mxu0
    %1005 = vmatprep.mubr.f32.mxu0 0.0
    %1006 = vmatmul.mubr.f32.gmra.mrb[0].mxu0 %v869
    %v1007 = vpop.f32.mrb[0].mxu0
    %v1008 = vadd.f32 0.0, %v1007
    %v1009 = vpop.f32.mrb[0].mxu0
    %1010 = vmatprep.mubr.f32.mxu0 0.0
    %1011 = vmatmul.mubr.f32.gmra.mrb[0].mxu0 %v870
    %v1012 = vpop.f32.mrb[0].mxu0
    %v1013 = vadd.f32 0.0, %v1012
    %v1014 = vpop.f32.mrb[0].mxu0
    %1015 = vmatprep.mubr.f32.mxu0 0.0
    %1016 = vmatmul.mubr.f32.gmra.mrb[0].mxu0 %v871
    %v1017 = vpop.f32.mrb[0].mxu0
    %v1018 = vadd.f32 0.0, %v1017
    %v1019 = vpop.f32.mrb[0].mxu0
    %1020 = vmatprep.mubr.f32.mxu0 0.0
    %1021 = vmatmul.mubr.f32.gmra.mrb[0].mxu0 %v872
    %v1022 = vpop.f32.mrb[0].mxu0
    %v1023 = vadd.f32 0.0, %v1022
    %v1024 = vpop.f32.mrb[0].mxu0
    %1025 = vmatprep.mubr.f32.mxu0 0.0
    %1026 = vmatmul.mubr.f32.gmra.mrb[0].mxu0 %v873
    %v1027 = vpop.f32.mrb[0].mxu0
    %v1028 = vadd.f32 0.0, %v1027
    %v1029 = vpop.f32.mrb[0].mxu0
    %1030 = vmatprep.mubr.f32.mxu0 0.0
    %1031 = vmatmul.mubr.f32.gmra.mrb[0].mxu0 %v874
    %v1032 = vpop.f32.mrb[0].mxu0
    %v1033 = vadd.f32 0.0, %v1032
    %v1034 = vpop.f32.mrb[0].mxu0
    %1035 = vdwg.mxu0
    %v1036 = vld [vmem:[%s9] sm:$0x1]
    %v1038 = vlaneseq
    %v1039 = vshrl.u32 %v1038, 7
    %v1040 = vsub.s32 0, %v1039
    %v1041 = vrot.slane %v1036, %v1040
    %1043 = vmatprep.subr.mxu0 0.0
    %1044 = vmatpush1.msra.mxu0 %v958
    %1045 = vmatprep.subr.mxu0 0.0
    %1046 = vmatpush1.msra.mxu0 %v963
    %1047 = vmatprep.subr.mxu0 0.0
    %1048 = vmatpush1.msra.mxu0 %v968
    %1049 = vmatprep.subr.mxu0 0.0
    %1050 = vmatpush1.msra.mxu0 %v973
    %1051 = vmatprep.subr.mxu0 0.0
    %1052 = vmatpush1.msra.mxu0 %v978
    %1053 = vmatprep.subr.mxu0 0.0
    %1054 = vmatpush1.msra.mxu0 %v983
    %1055 = vmatprep.subr.mxu0 0.0
    %1056 = vmatpush1.msra.mxu0 %v988
    %1057 = vmatprep.subr.mxu0 0.0
    %1058 = vmatpush1.msra.mxu0 %v993
    %1059 = vmatprep.subr.mxu0 0.0
    %1060 = vmatpush1.msra.mxu0 %v998
    %1061 = vmatprep.subr.mxu0 0.0
    %1062 = vmatpush1.msra.mxu0 %v1003
    %1063 = vmatprep.subr.mxu0 0.0
    %1064 = vmatpush1.msra.mxu0 %v1008
    %1065 = vmatprep.subr.mxu0 0.0
    %1066 = vmatpush1.msra.mxu0 %v1013
    %1067 = vmatprep.subr.mxu0 0.0
    %1068 = vmatpush1.msra.mxu0 %v1018
    %1069 = vmatprep.subr.mxu0 0.0
    %1070 = vmatpush1.msra.mxu0 %v1023
    %1071 = vmatprep.subr.mxu0 0.0
    %1072 = vmatpush1.msra.mxu0 %v1028
    %1073 = vmatprep.subr.mxu0 0.0
    %1074 = vmatpush1.msra.mxu0 %v1033
    %1075 = vmatprep.subr.mxu0 0.0
    %1076 = vmatpush1.msra.mxu0 0.0
    %1077 = vmatprep.subr.mxu0 0.0
    %1078 = vmatpush1.msra.mxu0 0.0
    %1079 = vmatprep.subr.mxu0 0.0
    %1080 = vmatpush1.msra.mxu0 0.0
    %1081 = vmatprep.subr.mxu0 0.0
    %1082 = vmatpush1.msra.mxu0 0.0
    %1083 = vmatprep.subr.mxu0 0.0
    %1084 = vmatpush1.msra.mxu0 0.0
    %1085 = vmatprep.subr.mxu0 0.0
    %1086 = vmatpush1.msra.mxu0 0.0
    %1087 = vmatprep.subr.mxu0 0.0
    %1088 = vmatpush1.msra.mxu0 0.0
    %1089 = vmatprep.subr.mxu0 0.0
    %1090 = vmatpush1.msra.mxu0 0.0
    %1091 = vmatprep.subr.mxu0 0.0
    %1092 = vmatpush1.msra.mxu0 0.0
    %1093 = vmatprep.subr.mxu0 0.0
    %1094 = vmatpush1.msra.mxu0 0.0
    %1095 = vmatprep.subr.mxu0 0.0
    %1096 = vmatpush1.msra.mxu0 0.0
    %1097 = vmatprep.subr.mxu0 0.0
    %1098 = vmatpush1.msra.mxu0 0.0
    %1099 = vmatprep.subr.mxu0 0.0
    %1100 = vmatpush1.msra.mxu0 0.0
    %1101 = vmatprep.subr.mxu0 0.0
    %1102 = vmatpush1.msra.mxu0 0.0
    %1103 = vmatprep.subr.mxu0 0.0
    %1104 = vmatpush1.msra.mxu0 0.0
    %1105 = vmatprep.subr.mxu0 0.0
    %1106 = vmatpush1.msra.mxu0 0.0
    %1107 = vmatprep.mubr.f32.mxu0 0.0
    %1108 = vmatmul.mubr.f32.gmra.mrb[0].mxu0 %v107
    %v1109 = vpop.f32.mrb[0].mxu0
    %v1110 = vadd.f32 %v1041, %v1109
    %v1111 = vpop.f32.mrb[0].mxu0
    %1112 = vmatprep.mubr.f32.mxu0 0.0
    %1113 = vmatmul.mubr.f32.gmra.mrb[0].mxu0 %v108
    %v1114 = vpop.f32.mrb[0].mxu0
    %v1115 = vadd.f32 %v1041, %v1114
    %v1116 = vpop.f32.mrb[0].mxu0
    %1117 = vmatprep.mubr.f32.mxu0 0.0
    %1118 = vmatmul.mubr.f32.gmra.mrb[0].mxu0 %v109
    %v1119 = vpop.f32.mrb[0].mxu0
    %v1120 = vadd.f32 %v1041, %v1119
    %v1121 = vpop.f32.mrb[0].mxu0
    %1122 = vmatprep.mubr.f32.mxu0 0.0
    %1123 = vmatmul.mubr.f32.gmra.mrb[0].mxu0 %v110
    %v1124 = vpop.f32.mrb[0].mxu0
    %v1125 = vadd.f32 %v1041, %v1124
    %v1126 = vpop.f32.mrb[0].mxu0
    %1127 = vmatprep.mubr.f32.mxu0 0.0
    %1128 = vmatmul.mubr.f32.gmra.mrb[0].mxu0 %v111
    %v1129 = vpop.f32.mrb[0].mxu0
    %v1130 = vadd.f32 %v1041, %v1129
    %v1131 = vpop.f32.mrb[0].mxu0
    %1132 = vmatprep.mubr.f32.mxu0 0.0
    %1133 = vmatmul.mubr.f32.gmra.mrb[0].mxu0 %v112
    %v1134 = vpop.f32.mrb[0].mxu0
    %v1135 = vadd.f32 %v1041, %v1134
    %v1136 = vpop.f32.mrb[0].mxu0
    %1137 = vmatprep.mubr.f32.mxu0 0.0
    %1138 = vmatmul.mubr.f32.gmra.mrb[0].mxu0 %v113
    %v1139 = vpop.f32.mrb[0].mxu0
    %v1140 = vadd.f32 %v1041, %v1139
    %v1141 = vpop.f32.mrb[0].mxu0
    %1142 = vmatprep.mubr.f32.mxu0 0.0
    %1143 = vmatmul.mubr.f32.gmra.mrb[0].mxu0 %v114
    %v1144 = vpop.f32.mrb[0].mxu0
    %v1145 = vadd.f32 %v1041, %v1144
    %v1146 = vpop.f32.mrb[0].mxu0
    %1147 = vmatprep.mubr.f32.mxu0 0.0
    %1148 = vmatmul.mubr.f32.gmra.mrb[0].mxu0 %v115
    %v1149 = vpop.f32.mrb[0].mxu0
    %v1150 = vadd.f32 %v1041, %v1149
    %v1151 = vpop.f32.mrb[0].mxu0
    %1152 = vmatprep.mubr.f32.mxu0 0.0
    %1153 = vmatmul.mubr.f32.gmra.mrb[0].mxu0 %v116
    %v1154 = vpop.f32.mrb[0].mxu0
    %v1155 = vadd.f32 %v1041, %v1154
    %v1156 = vpop.f32.mrb[0].mxu0
    %1157 = vmatprep.mubr.f32.mxu0 0.0
    %1158 = vmatmul.mubr.f32.gmra.mrb[0].mxu0 %v117
    %v1159 = vpop.f32.mrb[0].mxu0
    %v1160 = vadd.f32 %v1041, %v1159
    %v1161 = vpop.f32.mrb[0].mxu0
    %1162 = vmatprep.mubr.f32.mxu0 0.0
    %1163 = vmatmul.mubr.f32.gmra.mrb[0].mxu0 %v118
    %v1164 = vpop.f32.mrb[0].mxu0
    %v1165 = vadd.f32 %v1041, %v1164
    %v1166 = vpop.f32.mrb[0].mxu0
    %1167 = vmatprep.mubr.f32.mxu0 0.0
    %1168 = vmatmul.mubr.f32.gmra.mrb[0].mxu0 %v119
    %v1169 = vpop.f32.mrb[0].mxu0
    %v1170 = vadd.f32 %v1041, %v1169
    %v1171 = vpop.f32.mrb[0].mxu0
    %1172 = vmatprep.mubr.f32.mxu0 0.0
    %1173 = vmatmul.mubr.f32.gmra.mrb[0].mxu0 %v120
    %v1174 = vpop.f32.mrb[0].mxu0
    %v1175 = vadd.f32 %v1041, %v1174
    %v1176 = vpop.f32.mrb[0].mxu0
    %1177 = vmatprep.mubr.f32.mxu0 0.0
    %1178 = vmatmul.mubr.f32.gmra.mrb[0].mxu0 %v121
    %v1179 = vpop.f32.mrb[0].mxu0
    %v1180 = vadd.f32 %v1041, %v1179
    %v1181 = vpop.f32.mrb[0].mxu0
    %1182 = vmatprep.mubr.f32.mxu0 0.0
    %1183 = vmatmul.mubr.f32.gmra.mrb[0].mxu0 %v122
    %v1184 = vpop.f32.mrb[0].mxu0
    %v1185 = vadd.f32 %v1041, %v1184
    %v1186 = vpop.f32.mrb[0].mxu0
    %1187 = vdwg.mxu0
    %v1188 = vld [vmem:[%s10] sm:$0x1]
    %v1190 = vlaneseq
    %v1191 = vshrl.u32 %v1190, 7
    %v1192 = vsub.s32 0, %v1191
    %v1193 = vrot.slane %v1188, %v1192
    %v1195 = vadd.f32 %v1110, %v1193
    %v1196 = vadd.f32 %v1115, %v1193
    %v1197 = vadd.f32 %v1120, %v1193
    %v1198 = vadd.f32 %v1125, %v1193
    %v1199 = vadd.f32 %v1130, %v1193
    %v1200 = vadd.f32 %v1135, %v1193
    %v1201 = vadd.f32 %v1140, %v1193
    %v1202 = vadd.f32 %v1145, %v1193
    %v1203 = vadd.f32 %v1150, %v1193
    %v1204 = vadd.f32 %v1155, %v1193
    %v1205 = vadd.f32 %v1160, %v1193
    %v1206 = vadd.f32 %v1165, %v1193
    %v1207 = vadd.f32 %v1170, %v1193
    %v1208 = vadd.f32 %v1175, %v1193
    %v1209 = vadd.f32 %v1180, %v1193
    %v1210 = vadd.f32 %v1185, %v1193
    %1211 = vmax.xlane.f32.xlu0 %v1195
    %v1212 = vpop.xlane.xlu0 %1211
    %1213 = vmax.xlane.f32.xlu0 %v1196
    %v1214 = vpop.xlane.xlu0 %1213
    %1215 = vmax.xlane.f32.xlu0 %v1197
    %v1216 = vpop.xlane.xlu0 %1215
    %1217 = vmax.xlane.f32.xlu0 %v1198
    %v1218 = vpop.xlane.xlu0 %1217
    %1219 = vmax.xlane.f32.xlu0 %v1199
    %v1220 = vpop.xlane.xlu0 %1219
    %1221 = vmax.xlane.f32.xlu0 %v1200
    %v1222 = vpop.xlane.xlu0 %1221
    %1223 = vmax.xlane.f32.xlu0 %v1201
    %v1224 = vpop.xlane.xlu0 %1223
    %1225 = vmax.xlane.f32.xlu0 %v1202
    %v1226 = vpop.xlane.xlu0 %1225
    %1227 = vmax.xlane.f32.xlu0 %v1203
    %v1228 = vpop.xlane.xlu0 %1227
    %1229 = vmax.xlane.f32.xlu0 %v1204
    %v1230 = vpop.xlane.xlu0 %1229
    %1231 = vmax.xlane.f32.xlu0 %v1205
    %v1232 = vpop.xlane.xlu0 %1231
    %1233 = vmax.xlane.f32.xlu0 %v1206
    %v1234 = vpop.xlane.xlu0 %1233
    %1235 = vmax.xlane.f32.xlu0 %v1207
    %v1236 = vpop.xlane.xlu0 %1235
    %1237 = vmax.xlane.f32.xlu0 %v1208
    %v1238 = vpop.xlane.xlu0 %1237
    %1239 = vmax.xlane.f32.xlu0 %v1209
    %v1240 = vpop.xlane.xlu0 %1239
    %1241 = vmax.xlane.f32.xlu0 %v1210
    %v1242 = vpop.xlane.xlu0 %1241
    %v1243 = vsub.f32 %v1195, %v1212
    %v1244 = vsub.f32 %v1196, %v1214
    %v1245 = vsub.f32 %v1197, %v1216
    %v1246 = vsub.f32 %v1198, %v1218
    %v1247 = vsub.f32 %v1199, %v1220
    %v1248 = vsub.f32 %v1200, %v1222
    %v1249 = vsub.f32 %v1201, %v1224
    %v1250 = vsub.f32 %v1202, %v1226
    %v1251 = vsub.f32 %v1203, %v1228
    %v1252 = vsub.f32 %v1204, %v1230
    %v1253 = vsub.f32 %v1205, %v1232
    %v1254 = vsub.f32 %v1206, %v1234
    %v1255 = vsub.f32 %v1207, %v1236
    %v1256 = vsub.f32 %v1208, %v1238
    %v1257 = vsub.f32 %v1209, %v1240
    %v1258 = vsub.f32 %v1210, %v1242
    %v1259 = vmul.f32 %v1243, 1.442695
    %v1260 = vpow.pop %v1259
    %v1261 = vmul.f32 %v1244, 1.442695
    %v1262 = vpow.pop %v1261
    %v1263 = vmul.f32 %v1245, 1.442695
    %v1264 = vpow.pop %v1263
    %v1265 = vmul.f32 %v1246, 1.442695
    %v1266 = vpow.pop %v1265
    %v1267 = vmul.f32 %v1247, 1.442695
    %v1268 = vpow.pop %v1267
    %v1269 = vmul.f32 %v1248, 1.442695
    %v1270 = vpow.pop %v1269
    %v1271 = vmul.f32 %v1249, 1.442695
    %v1272 = vpow.pop %v1271
    %v1273 = vmul.f32 %v1250, 1.442695
    %v1274 = vpow.pop %v1273
    %v1275 = vmul.f32 %v1251, 1.442695
    %v1276 = vpow.pop %v1275
    %v1277 = vmul.f32 %v1252, 1.442695
    %v1278 = vpow.pop %v1277
    %v1279 = vmul.f32 %v1253, 1.442695
    %v1280 = vpow.pop %v1279
    %v1281 = vmul.f32 %v1254, 1.442695
    %v1282 = vpow.pop %v1281
    %v1283 = vmul.f32 %v1255, 1.442695
    %v1284 = vpow.pop %v1283
    %v1285 = vmul.f32 %v1256, 1.442695
    %v1286 = vpow.pop %v1285
    %v1287 = vmul.f32 %v1257, 1.442695
    %v1288 = vpow.pop %v1287
    %v1289 = vmul.f32 %v1258, 1.442695
    %v1290 = vpow.pop %v1289
    %1291 = vadd.xlane.f32.xlu0 %v1260
    %v1292 = vpop.xlane.xlu0 %1291
    %1293 = vadd.xlane.f32.xlu0 %v1262
    %v1294 = vpop.xlane.xlu0 %1293
    %1295 = vadd.xlane.f32.xlu0 %v1264
    %v1296 = vpop.xlane.xlu0 %1295
    %1297 = vadd.xlane.f32.xlu0 %v1266
    %v1298 = vpop.xlane.xlu0 %1297
    %1299 = vadd.xlane.f32.xlu0 %v1268
    %v1300 = vpop.xlane.xlu0 %1299
    %1301 = vadd.xlane.f32.xlu0 %v1270
    %v1302 = vpop.xlane.xlu0 %1301
    %1303 = vadd.xlane.f32.xlu0 %v1272
    %v1304 = vpop.xlane.xlu0 %1303
    %1305 = vadd.xlane.f32.xlu0 %v1274
    %v1306 = vpop.xlane.xlu0 %1305
    %1307 = vadd.xlane.f32.xlu0 %v1276
    %v1308 = vpop.xlane.xlu0 %1307
    %1309 = vadd.xlane.f32.xlu0 %v1278
    %v1310 = vpop.xlane.xlu0 %1309
    %1311 = vadd.xlane.f32.xlu0 %v1280
    %v1312 = vpop.xlane.xlu0 %1311
    %1313 = vadd.xlane.f32.xlu0 %v1282
    %v1314 = vpop.xlane.xlu0 %1313
    %1315 = vadd.xlane.f32.xlu0 %v1284
    %v1316 = vpop.xlane.xlu0 %1315
    %1317 = vadd.xlane.f32.xlu0 %v1286
    %v1318 = vpop.xlane.xlu0 %1317
    %1319 = vadd.xlane.f32.xlu0 %v1288
    %v1320 = vpop.xlane.xlu0 %1319
    %1321 = vadd.xlane.f32.xlu0 %v1290
    %v1322 = vpop.xlane.xlu0 %1321
    %v1323 = vlog2.pop %v1292
    %v1324 = vmul.f32 %v1323, 0.6931472
    %v1325 = vlog2.pop %v1294
    %v1326 = vmul.f32 %v1325, 0.6931472
    %v1327 = vlog2.pop %v1296
    %v1328 = vmul.f32 %v1327, 0.6931472
    %v1329 = vlog2.pop %v1298
    %v1330 = vmul.f32 %v1329, 0.6931472
    %v1331 = vlog2.pop %v1300
    %v1332 = vmul.f32 %v1331, 0.6931472
    %v1333 = vlog2.pop %v1302
    %v1334 = vmul.f32 %v1333, 0.6931472
    %v1335 = vlog2.pop %v1304
    %v1336 = vmul.f32 %v1335, 0.6931472
    %v1337 = vlog2.pop %v1306
    %v1338 = vmul.f32 %v1337, 0.6931472
    %v1339 = vlog2.pop %v1308
    %v1340 = vmul.f32 %v1339, 0.6931472
    %v1341 = vlog2.pop %v1310
    %v1342 = vmul.f32 %v1341, 0.6931472
    %v1343 = vlog2.pop %v1312
    %v1344 = vmul.f32 %v1343, 0.6931472
    %v1345 = vlog2.pop %v1314
    %v1346 = vmul.f32 %v1345, 0.6931472
    %v1347 = vlog2.pop %v1316
    %v1348 = vmul.f32 %v1347, 0.6931472
    %v1349 = vlog2.pop %v1318
    %v1350 = vmul.f32 %v1349, 0.6931472
    %v1351 = vlog2.pop %v1320
    %v1352 = vmul.f32 %v1351, 0.6931472
    %v1353 = vlog2.pop %v1322
    %v1354 = vmul.f32 %v1353, 0.6931472
    %v1355 = vadd.f32 %v1324, %v1212
    %v1356 = vadd.f32 %v1326, %v1214
    %v1357 = vadd.f32 %v1328, %v1216
    %v1358 = vadd.f32 %v1330, %v1218
    %v1359 = vadd.f32 %v1332, %v1220
    %v1360 = vadd.f32 %v1334, %v1222
    %v1361 = vadd.f32 %v1336, %v1224
    %v1362 = vadd.f32 %v1338, %v1226
    %v1363 = vadd.f32 %v1340, %v1228
    %v1364 = vadd.f32 %v1342, %v1230
    %v1365 = vadd.f32 %v1344, %v1232
    %v1366 = vadd.f32 %v1346, %v1234
    %v1367 = vadd.f32 %v1348, %v1236
    %v1368 = vadd.f32 %v1350, %v1238
    %v1369 = vadd.f32 %v1352, %v1240
    %v1370 = vadd.f32 %v1354, %v1242
    %v1371 = vsub.f32 %v1195, %v1355
    %v1372 = vsub.f32 %v1196, %v1356
    %v1373 = vsub.f32 %v1197, %v1357
    %v1374 = vsub.f32 %v1198, %v1358
    %v1375 = vsub.f32 %v1199, %v1359
    %v1376 = vsub.f32 %v1200, %v1360
    %v1377 = vsub.f32 %v1201, %v1361
    %v1378 = vsub.f32 %v1202, %v1362
    %v1379 = vsub.f32 %v1203, %v1363
    %v1380 = vsub.f32 %v1204, %v1364
    %v1381 = vsub.f32 %v1205, %v1365
    %v1382 = vsub.f32 %v1206, %v1366
    %v1383 = vsub.f32 %v1207, %v1367
    %v1384 = vsub.f32 %v1208, %v1368
    %v1385 = vsub.f32 %v1209, %v1369
    %v1386 = vsub.f32 %v1210, %v1370
    %1387 = vst [vmem:[#allocation11] sm:$0xff] %v1371
    %1388 = vst [vmem:[#allocation11 + $0x8] sm:$0xff] %v1372
    %1389 = vst [vmem:[#allocation11 + $0x10] sm:$0xff] %v1373
    %1390 = vst [vmem:[#allocation11 + $0x18] sm:$0xff] %v1374
    %1391 = vst [vmem:[#allocation11 + $0x20] sm:$0xff] %v1375
    %1392 = vst [vmem:[#allocation11 + $0x28] sm:$0xff] %v1376
    %1393 = vst [vmem:[#allocation11 + $0x30] sm:$0xff] %v1377
    %1394 = vst [vmem:[#allocation11 + $0x38] sm:$0xff] %v1378
    %1395 = vst [vmem:[#allocation11 + $0x40] sm:$0xff] %v1379
    %1396 = vst [vmem:[#allocation11 + $0x48] sm:$0xff] %v1380
    %1397 = vst [vmem:[#allocation11 + $0x50] sm:$0xff] %v1381
    %1398 = vst [vmem:[#allocation11 + $0x58] sm:$0xff] %v1382
    %1399 = vst [vmem:[#allocation11 + $0x60] sm:$0xff] %v1383
    %1400 = vst [vmem:[#allocation11 + $0x68] sm:$0xff] %v1384
    %1401 = vst [vmem:[#allocation11 + $0x70] sm:$0xff] %v1385
    %1402 = vst [vmem:[#allocation11 + $0x78] sm:$0xff] %v1386
    // Predicated region
    $region66: #{tpu_custom_call.1} parent=1 // pred_check
      _
    $region67: #{tpu_custom_call.1} parent=1 // pred_check_branch
      %1404 = sbr.rel (0) target = $region69
    $region68: #{tpu_custom_call.1} parent=1 // pred_region
      %s1406 = ssub.s32 2048, 2048
      %1407 = vsyncadd [#allocation4], %s1406
      %s1408 = sshll.u32 [#allocation11], 4
      %s1409 = int_to_ptr.vmem [resolvable:$true] %s1408
      %1414 = dma.vmem_to_hbm [thread:$0]  %s1409, 2048, %s11, [#allocation4], 128, 128, 8
    $region69: #{tpu_custom_call.1} parent=1 // pred_fallthru
      _
    // Predicated region
    $region70: #{tpu_custom_call.1} parent=1 // pred_check
      _
    $region71: #{tpu_custom_call.1} parent=1 // pred_check_branch
      %1416 = sbr.rel (0) target = $region73
    $region72: #{tpu_custom_call.1} parent=1 // pred_region
      %1417 = dma.done [#allocation4], 2048
    $region73: #{tpu_custom_call.1} parent=1 // pred_fallthru
      _
    %1418 = vsyncpa [#allocation3], 1
    %1419 = vsyncpa [#allocation6], 1
    %1420 = vsyncpa [#allocation9], 1
    %1421 = vsyncpa [#allocation4], 1

</llo_original>
